<compile_context>
chip_gen: v5e
topology: v5e:2x2
jax: 0.10.0
libtpu: 0.0.40
codegen_flags: <defaults>
</compile_context>

<pallas_src>
from functools import partial

import jax
import jax.numpy as jnp
from jax.experimental import pallas as pl
from jax.experimental.pallas import tpu as pltpu


LAYER_DIMS = [(8, 50)] + [(50, 50)] * 8 + [(50, 1)]   # (in, out) per nn.Linear
NUM_LAYERS = len(LAYER_DIMS)
NUM_MID = 8          # the eight middle 50->50 layers
IN_DIM = 8
HID = 50
PAD = 64             # padded feature dim (multiple of 8 sublanes)
TILE_ALIGN = 256     # batch-tile granularity: two lane-aligned (128) half-tiles


def _round_up(n, m):
    return (n + m - 1) // m * m


def mlp_kernel(x_ref, w0_ref, b0_ref, wmid_ref, bmid_ref, wlast_ref, blast_ref, out_ref):
    """Batch-on-lanes MLP, two interleaved half-tiles.

    x_ref     : (8,  Bt)    f32   input features x batch tile
    w0_ref    : (64, 8)     cdt   layer-0 weight (out, in), zero-padded 50->64
    b0_ref    : (64, 1)     f32
    wmid_ref  : (8, 64, 64) cdt   layers 1..8, zero-padded 50->64 on both dims
    bmid_ref  : (8, 64, 1)  f32
    wlast_ref : (64, 1)     f32   final (1, 50) weight stored as a padded column
    blast_ref : (1, 1)      f32
    out_ref   : (1, Bt)     f32
    (cdt = MXU operand dtype, bf16 or f32; accumulation is always f32.)
    """
    cdt = w0_ref.dtype
    bt = x_ref.shape[1]
    half = bt // 2          # Bt is a multiple of 256 -> half is lane-aligned (128)

    x = x_ref[...].astype(cdt)
    xa, xb = x[:, :half], x[:, half:]

    # Layer 0: (64, 8) @ (8, half) -> (64, half).  Padded rows of w0/b0 are zero,
    # so padded activation rows stay exactly zero through every ReLU.
    w0 = w0_ref[...]
    b0 = b0_ref[...]
    ha = jnp.maximum(jnp.dot(w0, xa, preferred_element_type=jnp.float32) + b0, 0.0)
    hb = jnp.maximum(jnp.dot(w0, xb, preferred_element_type=jnp.float32) + b0, 0.0)

    # Layers 1..8 (statically unrolled): (64, 64) @ (64, half) on the MXU.
    # The two half-tiles are independent, so the scheduler can overlap one half's
    # matmul with the other half's bias+ReLU / result drain.
    for i in range(NUM_MID):
        w = wmid_ref[i]
        b = bmid_ref[i]
        pa = jnp.dot(w, ha.astype(cdt), preferred_element_type=jnp.float32)
        pb = jnp.dot(w, hb.astype(cdt), preferred_element_type=jnp.float32)
        ha = jnp.maximum(pa + b, 0.0)
        hb = jnp.maximum(pb + b, 0.0)

    # Final (1, 50) layer: lane-wise multiply + sublane reduction (VPU/XLU) keeps
    # the out=1 contraction off the MXU and the (1, Bt) store lane-dense.
    wl = wlast_ref[...]
    bl = blast_ref[...]
    oa = jnp.sum(wl * ha, axis=0, keepdims=True) + bl
    ob = jnp.sum(wl * hb, axis=0, keepdims=True) + bl
    out_ref[:, :half] = oa.astype(out_ref.dtype)
    out_ref[:, half:] = ob.astype(out_ref.dtype)


def pack_params(params, compute_dtype=jnp.bfloat16):
    """Pack + zero-pad the 10 Linear layers once, at init (hoisted out of the call path).

    params: list of (W (out,in), b (out,)) float32 in PyTorch Linear layout.
    Matmul weights are stored in `compute_dtype` (bf16 fast path on v6e/v7x; pass
    jnp.float32 to stay f32 end-to-end, e.g. on v5e).  Biases / final layer stay f32.
    """
    w0, b0 = params[0]                                      # (50, 8), (50,)
    w0_p = jnp.zeros((PAD, IN_DIM), jnp.float32).at[:HID, :].set(w0).astype(compute_dtype)
    b0_p = jnp.zeros((PAD, 1), jnp.float32).at[:HID, 0].set(b0)

    wmid = jnp.zeros((NUM_MID, PAD, PAD), jnp.float32)
    bmid = jnp.zeros((NUM_MID, PAD, 1), jnp.float32)
    for i in range(NUM_MID):
        w, b = params[1 + i]                                # (50, 50), (50,)
        wmid = wmid.at[i, :HID, :HID].set(w)
        bmid = bmid.at[i, :HID, 0].set(b)
    wmid = wmid.astype(compute_dtype)

    wl, bl = params[-1]                                     # (1, 50), (1,)
    wl_p = jnp.zeros((PAD, 1), jnp.float32).at[:HID, 0].set(wl[0])
    bl_p = jnp.asarray(bl, jnp.float32).reshape(1, 1)
    return w0_p, b0_p, wmid, bmid, wl_p, bl_p


def _choose_tile(B, b_tile):
    """Pick the batch tile: large (amortize per-step + MXU fill/drain overhead), but
    keep >=2 grid steps whenever the batch allows so v7x can use both TensorCores."""
    b_tile = _round_up(max(b_tile, TILE_ALIGN), TILE_ALIGN)
    b_pad_min = _round_up(B, TILE_ALIGN)
    b_tile = min(b_tile, b_pad_min)
    if b_pad_min >= 2 * TILE_ALIGN:
        b_tile = min(b_tile, _round_up(pl.cdiv(b_pad_min, 2), TILE_ALIGN))
    b_pad = _round_up(B, b_tile)
    return b_tile, b_pad


@partial(jax.jit, static_argnames=("b_tile",))
def feedforward_50_pallas(x, packed, *, b_tile=4096):
    """x: (B, 8) float32; packed: output of pack_params (packed once at init)."""
    B = x.shape[0]
    b_tile, b_pad = _choose_tile(B, b_tile)

    # Batch on the lane axis; zero-pad the batch to a multiple of the tile.
    x_t = jnp.pad(x.astype(jnp.float32).T, ((0, 0), (0, b_pad - B)))

    grid = (b_pad // b_tile,)
    const2 = lambda i: (0, 0)
    const3 = lambda i: (0, 0, 0)

    in_specs = [
        pl.BlockSpec((IN_DIM, b_tile), lambda i: (0, i)),        # x: streamed per block
        pl.BlockSpec((PAD, IN_DIM), const2),                     # w0: resident
        pl.BlockSpec((PAD, 1), const2),                          # b0
        pl.BlockSpec((NUM_MID, PAD, PAD), const3),               # packed middle weights
        pl.BlockSpec((NUM_MID, PAD, 1), const3),                 # packed middle biases
        pl.BlockSpec((PAD, 1), const2),                          # last weight (column)
        pl.BlockSpec((1, 1), const2),                            # last bias
    ]
    out_spec = pl.BlockSpec((1, b_tile), lambda i: (0, i))

    # Advisory cost estimate in padded dims (what the kernel actually executes).
    flops = 2 * b_pad * (PAD * IN_DIM + NUM_MID * PAD * PAD + PAD)
    param_bytes = sum(int(p.size) * p.dtype.itemsize for p in packed)
    cost = pl.CostEstimate(
        flops=flops,
        transcendentals=0,
        bytes_accessed=IN_DIM * b_pad * 4 + b_pad * 4 + param_bytes,
    )

    out_t = pl.pallas_call(
        mlp_kernel,
        out_shape=jax.ShapeDtypeStruct((1, b_pad), jnp.float32),
        grid=grid,
        in_specs=in_specs,
        out_specs=out_spec,
        compiler_params=pltpu.CompilerParams(
            dimension_semantics=("parallel",),   # megacore sharding on v7x
        ),
        cost_estimate=cost,
    )(x_t, *packed)

    return out_t.T[:B]   # (B, 1)


def init_params(key):
    """Deterministic init mimicking PyTorch Linear default (uniform +/- 1/sqrt(fan_in)).

    Returns params in PyTorch layout: W (out, in), b (out,).
    """
    params = []
    for (fan_in, fan_out) in LAYER_DIMS:
        key, kw, kb = jax.random.split(key, 3)
        bound = 1.0 / jnp.sqrt(fan_in)
        w = jax.random.uniform(kw, (fan_out, fan_in), jnp.float32, -bound, bound)
        b = jax.random.uniform(kb, (fan_out,), jnp.float32, -bound, bound)
        params.append((w, b))
    return params


def reference_forward(x, params, compute_dtype=jnp.float32):
    """Pure-JAX reference.  compute_dtype emulates the kernel's MXU operand dtype
    (f32 accumulation either way); the final Linear is f32 in both."""
    h = x.astype(jnp.float32)
    for i, (w, b) in enumerate(params):
        if i < NUM_LAYERS - 1:
            p = jnp.dot(h.astype(compute_dtype), w.T.astype(compute_dtype),
                        preferred_element_type=jnp.float32)
            h = jnp.maximum(p + b, 0.0)
        else:
            h = jnp.dot(h, w.T, preferred_element_type=jnp.float32) + b
    return h


if __name__ == "__main__":
    key = jax.random.PRNGKey(0)
    key, kx = jax.random.split(key)

    B = 300                      # not a multiple of the tile -> exercises padding + slicing
    x = jax.random.normal(kx, (B, IN_DIM), jnp.float32)
    params = init_params(key)

    # Pack (pad + bf16-cast) the weights once, outside the per-call path.
    packed = pack_params(params, compute_dtype=jnp.bfloat16)

    # Default b_tile=4096 is clamped to the batch; with B=300 this becomes
    # b_tile=256 over a 512-wide padded batch -> 2 "parallel" grid steps.
    out = feedforward_50_pallas(x, packed)
    out = jax.block_until_ready(out)

    assert out.shape == (B, 1)

    # Reference with the kernel's exact numerics (bf16 matmul operands, f32 accumulate).
    ref = reference_forward(x, params, compute_dtype=jnp.bfloat16)
    assert jnp.allclose(out, ref, atol=1e-3, rtol=1e-3), "mismatch vs reference"

    print("KERNEL_OK")
</pallas_src>

<mosaic_0001>
module attributes {stable_mosaic.version = 11 : i64} {
  func.func @mlp_kernel(%arg0: i32, %arg1: memref<8x256xf32, #tpu.memory_space<vmem>>, %arg2: memref<64x8xbf16, #tpu.memory_space<vmem>>, %arg3: memref<64x1xf32, #tpu.memory_space<vmem>>, %arg4: memref<8x64x64xbf16, #tpu.memory_space<vmem>>, %arg5: memref<8x64x1xf32, #tpu.memory_space<vmem>>, %arg6: memref<64x1xf32, #tpu.memory_space<vmem>>, %arg7: memref<1x1xf32, #tpu.memory_space<vmem>>, %arg8: memref<1x256xf32, #tpu.memory_space<vmem>>) attributes {dimension_semantics = [#tpu.dimension_semantics<parallel>], iteration_bounds = array<i64: 2>, scalar_prefetch = 0 : i64, scratch_operands = 0 : i64, tpu.core_type = #tpu.core_type<tc>, window_params = [{transform_indices = @transform_0, window_bounds = array<i64: 8, 256>}, {pipeline_mode = #tpu.pipeline_mode<synchronous>, transform_indices = @transform_1, window_bounds = array<i64: 64, 8>}, {pipeline_mode = #tpu.pipeline_mode<synchronous>, transform_indices = @transform_2, window_bounds = array<i64: 64, 1>}, {pipeline_mode = #tpu.pipeline_mode<synchronous>, transform_indices = @transform_3, window_bounds = array<i64: 8, 64, 64>}, {pipeline_mode = #tpu.pipeline_mode<synchronous>, transform_indices = @transform_4, window_bounds = array<i64: 8, 64, 1>}, {pipeline_mode = #tpu.pipeline_mode<synchronous>, transform_indices = @transform_5, window_bounds = array<i64: 64, 1>}, {pipeline_mode = #tpu.pipeline_mode<synchronous>, transform_indices = @transform_6, window_bounds = array<i64: 1, 1>}, {transform_indices = @transform_7, window_bounds = array<i64: 1, 256>}]} {
    %c0 = arith.constant 0 : index
    %c0_0 = arith.constant 0 : index
    %0 = vector.load %arg1[%c0, %c0_0] : memref<8x256xf32, #tpu.memory_space<vmem>>, vector<8x256xf32>
    %1 = arith.truncf %0 : vector<8x256xf32> to vector<8x256xbf16>
    %2 = vector.extract_strided_slice %1 {offsets = [0, 0], sizes = [8, 128], strides = [1, 1]} : vector<8x256xbf16> to vector<8x128xbf16>
    %3 = vector.extract_strided_slice %1 {offsets = [0, 128], sizes = [8, 128], strides = [1, 1]} : vector<8x256xbf16> to vector<8x128xbf16>
    %c0_1 = arith.constant 0 : index
    %c0_2 = arith.constant 0 : index
    %4 = vector.load %arg2[%c0_1, %c0_2] : memref<64x8xbf16, #tpu.memory_space<vmem>>, vector<64x8xbf16>
    %c0_3 = arith.constant 0 : index
    %c0_4 = arith.constant 0 : index
    %5 = vector.load %arg3[%c0_3, %c0_4] : memref<64x1xf32, #tpu.memory_space<vmem>>, vector<64x1xf32>
    %cst = arith.constant dense<0.000000e+00> : vector<64x128xf32>
    %6 = tpu.matmul %4, %2, %cst {dimension_numbers = #tpu.dot_dimension_numbers<[1], [0], [0], [1], [0, 0, 1, 1], [], []>} : vector<64x8xbf16>, vector<8x128xbf16>, vector<64x128xf32> -> vector<64x128xf32>
    %7 = vector.broadcast %5 : vector<64x1xf32> to vector<64x128xf32>
    %8 = arith.addf %6, %7 : vector<64x128xf32>
    %cst_5 = arith.constant 0.000000e+00 : f32
    %9 = vector.broadcast %cst_5 : f32 to vector<64x128xf32>
    %10 = arith.maximumf %8, %9 : vector<64x128xf32>
    %cst_6 = arith.constant dense<0.000000e+00> : vector<64x128xf32>
    %11 = tpu.matmul %4, %3, %cst_6 {dimension_numbers = #tpu.dot_dimension_numbers<[1], [0], [0], [1], [0, 0, 1, 1], [], []>} : vector<64x8xbf16>, vector<8x128xbf16>, vector<64x128xf32> -> vector<64x128xf32>
    %12 = vector.broadcast %5 : vector<64x1xf32> to vector<64x128xf32>
    %13 = arith.addf %11, %12 : vector<64x128xf32>
    %cst_7 = arith.constant 0.000000e+00 : f32
    %14 = vector.broadcast %cst_7 : f32 to vector<64x128xf32>
    %15 = arith.maximumf %13, %14 : vector<64x128xf32>
    %c0_8 = arith.constant 0 : index
    %c0_9 = arith.constant 0 : index
    %c0_10 = arith.constant 0 : index
    %16 = vector.load %arg4[%c0_8, %c0_9, %c0_10] : memref<8x64x64xbf16, #tpu.memory_space<vmem>>, vector<1x64x64xbf16>
    %17 = vector.shape_cast %16 : vector<1x64x64xbf16> to vector<64x64xbf16>
    %c0_11 = arith.constant 0 : index
    %c0_12 = arith.constant 0 : index
    %c0_13 = arith.constant 0 : index
    %18 = vector.load %arg5[%c0_11, %c0_12, %c0_13] : memref<8x64x1xf32, #tpu.memory_space<vmem>>, vector<1x64x1xf32>
    %19 = vector.shape_cast %18 : vector<1x64x1xf32> to vector<64x1xf32>
    %20 = arith.truncf %10 : vector<64x128xf32> to vector<64x128xbf16>
    %cst_14 = arith.constant dense<0.000000e+00> : vector<64x128xf32>
    %21 = tpu.matmul %17, %20, %cst_14 {dimension_numbers = #tpu.dot_dimension_numbers<[1], [0], [0], [1], [0, 0, 1, 1], [], []>} : vector<64x64xbf16>, vector<64x128xbf16>, vector<64x128xf32> -> vector<64x128xf32>
    %22 = arith.truncf %15 : vector<64x128xf32> to vector<64x128xbf16>
    %cst_15 = arith.constant dense<0.000000e+00> : vector<64x128xf32>
    %23 = tpu.matmul %17, %22, %cst_15 {dimension_numbers = #tpu.dot_dimension_numbers<[1], [0], [0], [1], [0, 0, 1, 1], [], []>} : vector<64x64xbf16>, vector<64x128xbf16>, vector<64x128xf32> -> vector<64x128xf32>
    %24 = vector.broadcast %19 : vector<64x1xf32> to vector<64x128xf32>
    %25 = arith.addf %21, %24 : vector<64x128xf32>
    %cst_16 = arith.constant 0.000000e+00 : f32
    %26 = vector.broadcast %cst_16 : f32 to vector<64x128xf32>
    %27 = arith.maximumf %25, %26 : vector<64x128xf32>
    %28 = vector.broadcast %19 : vector<64x1xf32> to vector<64x128xf32>
    %29 = arith.addf %23, %28 : vector<64x128xf32>
    %cst_17 = arith.constant 0.000000e+00 : f32
    %30 = vector.broadcast %cst_17 : f32 to vector<64x128xf32>
    %31 = arith.maximumf %29, %30 : vector<64x128xf32>
    %c1 = arith.constant 1 : index
    %c0_18 = arith.constant 0 : index
    %c0_19 = arith.constant 0 : index
    %32 = vector.load %arg4[%c1, %c0_18, %c0_19] : memref<8x64x64xbf16, #tpu.memory_space<vmem>>, vector<1x64x64xbf16>
    %33 = vector.shape_cast %32 : vector<1x64x64xbf16> to vector<64x64xbf16>
    %c1_20 = arith.constant 1 : index
    %c0_21 = arith.constant 0 : index
    %c0_22 = arith.constant 0 : index
    %34 = vector.load %arg5[%c1_20, %c0_21, %c0_22] : memref<8x64x1xf32, #tpu.memory_space<vmem>>, vector<1x64x1xf32>
    %35 = vector.shape_cast %34 : vector<1x64x1xf32> to vector<64x1xf32>
    %36 = arith.truncf %27 : vector<64x128xf32> to vector<64x128xbf16>
    %cst_23 = arith.constant dense<0.000000e+00> : vector<64x128xf32>
    %37 = tpu.matmul %33, %36, %cst_23 {dimension_numbers = #tpu.dot_dimension_numbers<[1], [0], [0], [1], [0, 0, 1, 1], [], []>} : vector<64x64xbf16>, vector<64x128xbf16>, vector<64x128xf32> -> vector<64x128xf32>
    %38 = arith.truncf %31 : vector<64x128xf32> to vector<64x128xbf16>
    %cst_24 = arith.constant dense<0.000000e+00> : vector<64x128xf32>
    %39 = tpu.matmul %33, %38, %cst_24 {dimension_numbers = #tpu.dot_dimension_numbers<[1], [0], [0], [1], [0, 0, 1, 1], [], []>} : vector<64x64xbf16>, vector<64x128xbf16>, vector<64x128xf32> -> vector<64x128xf32>
    %40 = vector.broadcast %35 : vector<64x1xf32> to vector<64x128xf32>
    %41 = arith.addf %37, %40 : vector<64x128xf32>
    %cst_25 = arith.constant 0.000000e+00 : f32
    %42 = vector.broadcast %cst_25 : f32 to vector<64x128xf32>
    %43 = arith.maximumf %41, %42 : vector<64x128xf32>
    %44 = vector.broadcast %35 : vector<64x1xf32> to vector<64x128xf32>
    %45 = arith.addf %39, %44 : vector<64x128xf32>
    %cst_26 = arith.constant 0.000000e+00 : f32
    %46 = vector.broadcast %cst_26 : f32 to vector<64x128xf32>
    %47 = arith.maximumf %45, %46 : vector<64x128xf32>
    %c2 = arith.constant 2 : index
    %c0_27 = arith.constant 0 : index
    %c0_28 = arith.constant 0 : index
    %48 = vector.load %arg4[%c2, %c0_27, %c0_28] : memref<8x64x64xbf16, #tpu.memory_space<vmem>>, vector<1x64x64xbf16>
    %49 = vector.shape_cast %48 : vector<1x64x64xbf16> to vector<64x64xbf16>
    %c2_29 = arith.constant 2 : index
    %c0_30 = arith.constant 0 : index
    %c0_31 = arith.constant 0 : index
    %50 = vector.load %arg5[%c2_29, %c0_30, %c0_31] : memref<8x64x1xf32, #tpu.memory_space<vmem>>, vector<1x64x1xf32>
    %51 = vector.shape_cast %50 : vector<1x64x1xf32> to vector<64x1xf32>
    %52 = arith.truncf %43 : vector<64x128xf32> to vector<64x128xbf16>
    %cst_32 = arith.constant dense<0.000000e+00> : vector<64x128xf32>
    %53 = tpu.matmul %49, %52, %cst_32 {dimension_numbers = #tpu.dot_dimension_numbers<[1], [0], [0], [1], [0, 0, 1, 1], [], []>} : vector<64x64xbf16>, vector<64x128xbf16>, vector<64x128xf32> -> vector<64x128xf32>
    %54 = arith.truncf %47 : vector<64x128xf32> to vector<64x128xbf16>
    %cst_33 = arith.constant dense<0.000000e+00> : vector<64x128xf32>
    %55 = tpu.matmul %49, %54, %cst_33 {dimension_numbers = #tpu.dot_dimension_numbers<[1], [0], [0], [1], [0, 0, 1, 1], [], []>} : vector<64x64xbf16>, vector<64x128xbf16>, vector<64x128xf32> -> vector<64x128xf32>
    %56 = vector.broadcast %51 : vector<64x1xf32> to vector<64x128xf32>
    %57 = arith.addf %53, %56 : vector<64x128xf32>
    %cst_34 = arith.constant 0.000000e+00 : f32
    %58 = vector.broadcast %cst_34 : f32 to vector<64x128xf32>
    %59 = arith.maximumf %57, %58 : vector<64x128xf32>
    %60 = vector.broadcast %51 : vector<64x1xf32> to vector<64x128xf32>
    %61 = arith.addf %55, %60 : vector<64x128xf32>
    %cst_35 = arith.constant 0.000000e+00 : f32
    %62 = vector.broadcast %cst_35 : f32 to vector<64x128xf32>
    %63 = arith.maximumf %61, %62 : vector<64x128xf32>
    %c3 = arith.constant 3 : index
    %c0_36 = arith.constant 0 : index
    %c0_37 = arith.constant 0 : index
    %64 = vector.load %arg4[%c3, %c0_36, %c0_37] : memref<8x64x64xbf16, #tpu.memory_space<vmem>>, vector<1x64x64xbf16>
    %65 = vector.shape_cast %64 : vector<1x64x64xbf16> to vector<64x64xbf16>
    %c3_38 = arith.constant 3 : index
    %c0_39 = arith.constant 0 : index
    %c0_40 = arith.constant 0 : index
    %66 = vector.load %arg5[%c3_38, %c0_39, %c0_40] : memref<8x64x1xf32, #tpu.memory_space<vmem>>, vector<1x64x1xf32>
    %67 = vector.shape_cast %66 : vector<1x64x1xf32> to vector<64x1xf32>
    %68 = arith.truncf %59 : vector<64x128xf32> to vector<64x128xbf16>
    %cst_41 = arith.constant dense<0.000000e+00> : vector<64x128xf32>
    %69 = tpu.matmul %65, %68, %cst_41 {dimension_numbers = #tpu.dot_dimension_numbers<[1], [0], [0], [1], [0, 0, 1, 1], [], []>} : vector<64x64xbf16>, vector<64x128xbf16>, vector<64x128xf32> -> vector<64x128xf32>
    %70 = arith.truncf %63 : vector<64x128xf32> to vector<64x128xbf16>
    %cst_42 = arith.constant dense<0.000000e+00> : vector<64x128xf32>
    %71 = tpu.matmul %65, %70, %cst_42 {dimension_numbers = #tpu.dot_dimension_numbers<[1], [0], [0], [1], [0, 0, 1, 1], [], []>} : vector<64x64xbf16>, vector<64x128xbf16>, vector<64x128xf32> -> vector<64x128xf32>
    %72 = vector.broadcast %67 : vector<64x1xf32> to vector<64x128xf32>
    %73 = arith.addf %69, %72 : vector<64x128xf32>
    %cst_43 = arith.constant 0.000000e+00 : f32
    %74 = vector.broadcast %cst_43 : f32 to vector<64x128xf32>
    %75 = arith.maximumf %73, %74 : vector<64x128xf32>
    %76 = vector.broadcast %67 : vector<64x1xf32> to vector<64x128xf32>
    %77 = arith.addf %71, %76 : vector<64x128xf32>
    %cst_44 = arith.constant 0.000000e+00 : f32
    %78 = vector.broadcast %cst_44 : f32 to vector<64x128xf32>
    %79 = arith.maximumf %77, %78 : vector<64x128xf32>
    %c4 = arith.constant 4 : index
    %c0_45 = arith.constant 0 : index
    %c0_46 = arith.constant 0 : index
    %80 = vector.load %arg4[%c4, %c0_45, %c0_46] : memref<8x64x64xbf16, #tpu.memory_space<vmem>>, vector<1x64x64xbf16>
    %81 = vector.shape_cast %80 : vector<1x64x64xbf16> to vector<64x64xbf16>
    %c4_47 = arith.constant 4 : index
    %c0_48 = arith.constant 0 : index
    %c0_49 = arith.constant 0 : index
    %82 = vector.load %arg5[%c4_47, %c0_48, %c0_49] : memref<8x64x1xf32, #tpu.memory_space<vmem>>, vector<1x64x1xf32>
    %83 = vector.shape_cast %82 : vector<1x64x1xf32> to vector<64x1xf32>
    %84 = arith.truncf %75 : vector<64x128xf32> to vector<64x128xbf16>
    %cst_50 = arith.constant dense<0.000000e+00> : vector<64x128xf32>
    %85 = tpu.matmul %81, %84, %cst_50 {dimension_numbers = #tpu.dot_dimension_numbers<[1], [0], [0], [1], [0, 0, 1, 1], [], []>} : vector<64x64xbf16>, vector<64x128xbf16>, vector<64x128xf32> -> vector<64x128xf32>
    %86 = arith.truncf %79 : vector<64x128xf32> to vector<64x128xbf16>
    %cst_51 = arith.constant dense<0.000000e+00> : vector<64x128xf32>
    %87 = tpu.matmul %81, %86, %cst_51 {dimension_numbers = #tpu.dot_dimension_numbers<[1], [0], [0], [1], [0, 0, 1, 1], [], []>} : vector<64x64xbf16>, vector<64x128xbf16>, vector<64x128xf32> -> vector<64x128xf32>
    %88 = vector.broadcast %83 : vector<64x1xf32> to vector<64x128xf32>
    %89 = arith.addf %85, %88 : vector<64x128xf32>
    %cst_52 = arith.constant 0.000000e+00 : f32
    %90 = vector.broadcast %cst_52 : f32 to vector<64x128xf32>
    %91 = arith.maximumf %89, %90 : vector<64x128xf32>
    %92 = vector.broadcast %83 : vector<64x1xf32> to vector<64x128xf32>
    %93 = arith.addf %87, %92 : vector<64x128xf32>
    %cst_53 = arith.constant 0.000000e+00 : f32
    %94 = vector.broadcast %cst_53 : f32 to vector<64x128xf32>
    %95 = arith.maximumf %93, %94 : vector<64x128xf32>
    %c5 = arith.constant 5 : index
    %c0_54 = arith.constant 0 : index
    %c0_55 = arith.constant 0 : index
    %96 = vector.load %arg4[%c5, %c0_54, %c0_55] : memref<8x64x64xbf16, #tpu.memory_space<vmem>>, vector<1x64x64xbf16>
    %97 = vector.shape_cast %96 : vector<1x64x64xbf16> to vector<64x64xbf16>
    %c5_56 = arith.constant 5 : index
    %c0_57 = arith.constant 0 : index
    %c0_58 = arith.constant 0 : index
    %98 = vector.load %arg5[%c5_56, %c0_57, %c0_58] : memref<8x64x1xf32, #tpu.memory_space<vmem>>, vector<1x64x1xf32>
    %99 = vector.shape_cast %98 : vector<1x64x1xf32> to vector<64x1xf32>
    %100 = arith.truncf %91 : vector<64x128xf32> to vector<64x128xbf16>
    %cst_59 = arith.constant dense<0.000000e+00> : vector<64x128xf32>
    %101 = tpu.matmul %97, %100, %cst_59 {dimension_numbers = #tpu.dot_dimension_numbers<[1], [0], [0], [1], [0, 0, 1, 1], [], []>} : vector<64x64xbf16>, vector<64x128xbf16>, vector<64x128xf32> -> vector<64x128xf32>
    %102 = arith.truncf %95 : vector<64x128xf32> to vector<64x128xbf16>
    %cst_60 = arith.constant dense<0.000000e+00> : vector<64x128xf32>
    %103 = tpu.matmul %97, %102, %cst_60 {dimension_numbers = #tpu.dot_dimension_numbers<[1], [0], [0], [1], [0, 0, 1, 1], [], []>} : vector<64x64xbf16>, vector<64x128xbf16>, vector<64x128xf32> -> vector<64x128xf32>
    %104 = vector.broadcast %99 : vector<64x1xf32> to vector<64x128xf32>
    %105 = arith.addf %101, %104 : vector<64x128xf32>
    %cst_61 = arith.constant 0.000000e+00 : f32
    %106 = vector.broadcast %cst_61 : f32 to vector<64x128xf32>
    %107 = arith.maximumf %105, %106 : vector<64x128xf32>
    %108 = vector.broadcast %99 : vector<64x1xf32> to vector<64x128xf32>
    %109 = arith.addf %103, %108 : vector<64x128xf32>
    %cst_62 = arith.constant 0.000000e+00 : f32
    %110 = vector.broadcast %cst_62 : f32 to vector<64x128xf32>
    %111 = arith.maximumf %109, %110 : vector<64x128xf32>
    %c6 = arith.constant 6 : index
    %c0_63 = arith.constant 0 : index
    %c0_64 = arith.constant 0 : index
    %112 = vector.load %arg4[%c6, %c0_63, %c0_64] : memref<8x64x64xbf16, #tpu.memory_space<vmem>>, vector<1x64x64xbf16>
    %113 = vector.shape_cast %112 : vector<1x64x64xbf16> to vector<64x64xbf16>
    %c6_65 = arith.constant 6 : index
    %c0_66 = arith.constant 0 : index
    %c0_67 = arith.constant 0 : index
    %114 = vector.load %arg5[%c6_65, %c0_66, %c0_67] : memref<8x64x1xf32, #tpu.memory_space<vmem>>, vector<1x64x1xf32>
    %115 = vector.shape_cast %114 : vector<1x64x1xf32> to vector<64x1xf32>
    %116 = arith.truncf %107 : vector<64x128xf32> to vector<64x128xbf16>
    %cst_68 = arith.constant dense<0.000000e+00> : vector<64x128xf32>
    %117 = tpu.matmul %113, %116, %cst_68 {dimension_numbers = #tpu.dot_dimension_numbers<[1], [0], [0], [1], [0, 0, 1, 1], [], []>} : vector<64x64xbf16>, vector<64x128xbf16>, vector<64x128xf32> -> vector<64x128xf32>
    %118 = arith.truncf %111 : vector<64x128xf32> to vector<64x128xbf16>
    %cst_69 = arith.constant dense<0.000000e+00> : vector<64x128xf32>
    %119 = tpu.matmul %113, %118, %cst_69 {dimension_numbers = #tpu.dot_dimension_numbers<[1], [0], [0], [1], [0, 0, 1, 1], [], []>} : vector<64x64xbf16>, vector<64x128xbf16>, vector<64x128xf32> -> vector<64x128xf32>
    %120 = vector.broadcast %115 : vector<64x1xf32> to vector<64x128xf32>
    %121 = arith.addf %117, %120 : vector<64x128xf32>
    %cst_70 = arith.constant 0.000000e+00 : f32
    %122 = vector.broadcast %cst_70 : f32 to vector<64x128xf32>
    %123 = arith.maximumf %121, %122 : vector<64x128xf32>
    %124 = vector.broadcast %115 : vector<64x1xf32> to vector<64x128xf32>
    %125 = arith.addf %119, %124 : vector<64x128xf32>
    %cst_71 = arith.constant 0.000000e+00 : f32
    %126 = vector.broadcast %cst_71 : f32 to vector<64x128xf32>
    %127 = arith.maximumf %125, %126 : vector<64x128xf32>
    %c7 = arith.constant 7 : index
    %c0_72 = arith.constant 0 : index
    %c0_73 = arith.constant 0 : index
    %128 = vector.load %arg4[%c7, %c0_72, %c0_73] : memref<8x64x64xbf16, #tpu.memory_space<vmem>>, vector<1x64x64xbf16>
    %129 = vector.shape_cast %128 : vector<1x64x64xbf16> to vector<64x64xbf16>
    %c7_74 = arith.constant 7 : index
    %c0_75 = arith.constant 0 : index
    %c0_76 = arith.constant 0 : index
    %130 = vector.load %arg5[%c7_74, %c0_75, %c0_76] : memref<8x64x1xf32, #tpu.memory_space<vmem>>, vector<1x64x1xf32>
    %131 = vector.shape_cast %130 : vector<1x64x1xf32> to vector<64x1xf32>
    %132 = arith.truncf %123 : vector<64x128xf32> to vector<64x128xbf16>
    %cst_77 = arith.constant dense<0.000000e+00> : vector<64x128xf32>
    %133 = tpu.matmul %129, %132, %cst_77 {dimension_numbers = #tpu.dot_dimension_numbers<[1], [0], [0], [1], [0, 0, 1, 1], [], []>} : vector<64x64xbf16>, vector<64x128xbf16>, vector<64x128xf32> -> vector<64x128xf32>
    %134 = arith.truncf %127 : vector<64x128xf32> to vector<64x128xbf16>
    %cst_78 = arith.constant dense<0.000000e+00> : vector<64x128xf32>
    %135 = tpu.matmul %129, %134, %cst_78 {dimension_numbers = #tpu.dot_dimension_numbers<[1], [0], [0], [1], [0, 0, 1, 1], [], []>} : vector<64x64xbf16>, vector<64x128xbf16>, vector<64x128xf32> -> vector<64x128xf32>
    %136 = vector.broadcast %131 : vector<64x1xf32> to vector<64x128xf32>
    %137 = arith.addf %133, %136 : vector<64x128xf32>
    %cst_79 = arith.constant 0.000000e+00 : f32
    %138 = vector.broadcast %cst_79 : f32 to vector<64x128xf32>
    %139 = arith.maximumf %137, %138 : vector<64x128xf32>
    %140 = vector.broadcast %131 : vector<64x1xf32> to vector<64x128xf32>
    %141 = arith.addf %135, %140 : vector<64x128xf32>
    %cst_80 = arith.constant 0.000000e+00 : f32
    %142 = vector.broadcast %cst_80 : f32 to vector<64x128xf32>
    %143 = arith.maximumf %141, %142 : vector<64x128xf32>
    %c0_81 = arith.constant 0 : index
    %c0_82 = arith.constant 0 : index
    %144 = vector.load %arg6[%c0_81, %c0_82] : memref<64x1xf32, #tpu.memory_space<vmem>>, vector<64x1xf32>
    %c0_83 = arith.constant 0 : index
    %c0_84 = arith.constant 0 : index
    %145 = vector.load %arg7[%c0_83, %c0_84] : memref<1x1xf32, #tpu.memory_space<vmem>>, vector<1x1xf32>
    %146 = vector.broadcast %144 : vector<64x1xf32> to vector<64x128xf32>
    %147 = arith.mulf %146, %139 : vector<64x128xf32>
    %cst_85 = arith.constant dense<0.000000e+00> : vector<128xf32>
    %148 = vector.multi_reduction <add>, %147, %cst_85 [0] : vector<64x128xf32> to vector<128xf32>
    %149 = vector.shape_cast %148 : vector<128xf32> to vector<1x128xf32>
    %150 = vector.broadcast %145 : vector<1x1xf32> to vector<1x128xf32>
    %151 = arith.addf %149, %150 : vector<1x128xf32>
    %152 = vector.broadcast %144 : vector<64x1xf32> to vector<64x128xf32>
    %153 = arith.mulf %152, %143 : vector<64x128xf32>
    %cst_86 = arith.constant dense<0.000000e+00> : vector<128xf32>
    %154 = vector.multi_reduction <add>, %153, %cst_86 [0] : vector<64x128xf32> to vector<128xf32>
    %155 = vector.shape_cast %154 : vector<128xf32> to vector<1x128xf32>
    %156 = vector.broadcast %145 : vector<1x1xf32> to vector<1x128xf32>
    %157 = arith.addf %155, %156 : vector<1x128xf32>
    %c0_87 = arith.constant 0 : index
    %c0_88 = arith.constant 0 : index
    %158 = vector.load %arg8[%c0_87, %c0_88] : memref<1x256xf32, #tpu.memory_space<vmem>>, vector<1x128xf32>
    tpu.vector_store %arg8[%c0_87, %c0_88], %151 {strides = array<i32>} : memref<1x256xf32, #tpu.memory_space<vmem>>, vector<1x128xf32>,
    %c0_89 = arith.constant 0 : index
    %c128 = arith.constant 128 : index
    %159 = vector.load %arg8[%c0_89, %c128] : memref<1x256xf32, #tpu.memory_space<vmem>>, vector<1x128xf32>
    tpu.vector_store %arg8[%c0_89, %c128], %157 {strides = array<i32>} : memref<1x256xf32, #tpu.memory_space<vmem>>, vector<1x128xf32>,
    return
  }
  func.func @transform_0(%arg0: i32) -> (i32, i32) {
    %c0_i32 = arith.constant 0 : i32
    %c0_i32_0 = arith.constant 0 : i32
    return %c0_i32, %arg0 : i32, i32
  }
  func.func @transform_1(%arg0: i32) -> (i32, i32) {
    %c0_i32 = arith.constant 0 : i32
    %c0_i32_0 = arith.constant 0 : i32
    %c0_i32_1 = arith.constant 0 : i32
    return %c0_i32, %c0_i32_0 : i32, i32
  }
  func.func @transform_2(%arg0: i32) -> (i32, i32) {
    %c0_i32 = arith.constant 0 : i32
    %c0_i32_0 = arith.constant 0 : i32
    %c0_i32_1 = arith.constant 0 : i32
    return %c0_i32, %c0_i32_0 : i32, i32
  }
  func.func @transform_3(%arg0: i32) -> (i32, i32, i32) {
    %c0_i32 = arith.constant 0 : i32
    %c0_i32_0 = arith.constant 0 : i32
    %c0_i32_1 = arith.constant 0 : i32
    %c0_i32_2 = arith.constant 0 : i32
    return %c0_i32, %c0_i32_0, %c0_i32_1 : i32, i32, i32
  }
  func.func @transform_4(%arg0: i32) -> (i32, i32, i32) {
    %c0_i32 = arith.constant 0 : i32
    %c0_i32_0 = arith.constant 0 : i32
    %c0_i32_1 = arith.constant 0 : i32
    %c0_i32_2 = arith.constant 0 : i32
    return %c0_i32, %c0_i32_0, %c0_i32_1 : i32, i32, i32
  }
  func.func @transform_5(%arg0: i32) -> (i32, i32) {
    %c0_i32 = arith.constant 0 : i32
    %c0_i32_0 = arith.constant 0 : i32
    %c0_i32_1 = arith.constant 0 : i32
    return %c0_i32, %c0_i32_0 : i32, i32
  }
  func.func @transform_6(%arg0: i32) -> (i32, i32) {
    %c0_i32 = arith.constant 0 : i32
    %c0_i32_0 = arith.constant 0 : i32
    %c0_i32_1 = arith.constant 0 : i32
    return %c0_i32, %c0_i32_0 : i32, i32
  }
  func.func @transform_7(%arg0: i32) -> (i32, i32) {
    %c0_i32 = arith.constant 0 : i32
    %c0_i32_0 = arith.constant 0 : i32
    return %c0_i32, %arg0 : i32, i32
  }
}

</mosaic_0001>

<llo_original>
// kernel: feedforward_50_pallas.1
$region0: #{feedforward_50_pallas.1}
  #allocation0 [shape = 'u32[]', space=smem, size = 0x4, offset = 0x4, fixed_abs, tag = 'smem constant byte address 0x4 - core index']
  #allocation1 [shape = 'u32[72,128]{1,0:T(1,128)}', space=vmem, size = 0x9000, scoped, tag = 'internal scratch']
  #allocation2 [shape = 'f32[1,1]{1,0:T(1,128)S(1)}', space=vmem, size = 0x200, scoped, tag = 'scoped memory for feedforward_50_pallas.1']
  %s0 = inlined_call_operand.vmem [shape: f32[8,512], index: 0, kind: input, shape index: {}]
  %s1 = inlined_call_operand.vmem [shape: bf16[64,8], index: 1, kind: input, shape index: {}]
  %s2 = inlined_call_operand.vmem [shape: f32[64,1], index: 2, kind: input, shape index: {}]
  %s3 = inlined_call_operand.vmem [shape: bf16[8,64,64], index: 3, kind: input, shape index: {}]
  %s4 = inlined_call_operand.vmem [shape: f32[8,64,1], index: 4, kind: input, shape index: {}]
  %s5 = inlined_call_operand.vmem [shape: f32[64,1], index: 5, kind: input, shape index: {}]
  %s6 = inlined_call_operand.<no memory space> [shape: f32[1,1], index: 6, kind: input, shape index: {}]
  %s7 = inlined_call_operand.vmem [shape: f32[1,512], index: 7, kind: output, shape index: {}]
  %s8 = sld [smem:[#allocation0]]
  $region61: #{feedforward_50_pallas.1} parent=0
    _
  %s10 = ssub.s32 1, %s8
  %s11 = scalar_select 0, %s10, %s8
  %v12 = vstv %s6
  %13 = vst [vmem:[#allocation2] sm:$0x1] %v12
  loop: start=0, step=1, limit=4
  $region2: #{feedforward_50_pallas.1} parent=0 // loop_pre_header
    _
  $region3: #{feedforward_50_pallas.1} parent=0 // loop_header
    %s15 = sphi 0, %s19
    %p16 = scmp.ge.s32.totalorder %s15, 4
    %s25 = sphi 0, %s27
    %s28 = sphi 0, %s25
    %s29 = sphi 0, %s28
    %s45 = sphi 0, %s29
    %s49 = sphi 0, %s49
    %s51 = sphi 0, %s49
    %s52 = sphi 0, %s51
    %s66 = sphi 0, %s52
    %s70 = sphi 0, %s70
    %s72 = sphi 0, %s70
    %s73 = sphi 0, %s72
    %s87 = sphi 0, %s73
    %s91 = sphi 0, %s91
    %s93 = sphi 0, %s91
    %s94 = sphi 0, %s93
    %s108 = sphi 0, %s94
    %s112 = sphi 0, %s112
    %s114 = sphi 0, %s112
    %s115 = sphi 0, %s114
    %s129 = sphi 0, %s115
    %s133 = sphi 0, %s133
    %s135 = sphi 0, %s133
    %s136 = sphi 0, %s135
    %s150 = sphi 0, %s136
    %s154 = sphi 0, %s154
    %s156 = sphi 0, %s154
    %s157 = sphi 0, %s156
    %s171 = sphi 0, %s157
    %s177 = sphi 0, %s179
    %s180 = sphi 0, %s177
    %s181 = sphi 0, %s180
    %s197 = sphi 0, %s181
  $region4: #{feedforward_50_pallas.1} parent=0 // loop_header_branch
    %18 = sbr.rel (%p16) target = $region8
  $region5: #{feedforward_50_pallas.1} parent=0 // loop_body
    %s20 = ssub.s32 %s15, 1
    %s21 = ssub.s32 %s15, 2
    %s22 = sadd.s32 %s15, 1
    %s23 = ssub.s32 %s15, %s22
    %p24 = scmp.eq.s32.totalorder %s23, 0
    %s26 = sadd.s32 %s25, 1
    %s27 = scalar_select %p24, %s25, %s26
    %p30 = pneg %p24
    %p31 = scmp.eq.s32.totalorder %s15, 1
    %p32 = por %p30, %p31
    %p33 = scmp.ne.s32.totalorder %s25, %s28
    %p34 = scmp.eq.s32.totalorder %s15, 0
    %p35 = por %p33, %p34
    %p36 = scmp.ne.s32.totalorder %s25, %s28
    %p37 = scmp.eq.s32.totalorder %s20, 1
    %p38 = por %p36, %p37
    %p39 = scmp.ne.s32.totalorder %s28, %s29
    %p40 = scmp.eq.s32.totalorder %s20, 0
    %p41 = por %p39, %p40
    %p42 = scmp.ne.s32.totalorder %s28, %s29
    %p43 = scmp.eq.s32.totalorder %s21, 1
    %p44 = por %p42, %p43
    %p46 = scmp.ne.s32.totalorder %s29, %s45
    %p47 = scmp.eq.s32.totalorder %s21, 0
    %p48 = por %p46, %p47
    %s50 = sadd.s32 %s49, 1
    %p53 = scmp.eq.s32.totalorder %s15, 1
    %p54 = scmp.ne.s32.totalorder %s49, %s51
    %p55 = scmp.eq.s32.totalorder %s15, 0
    %p56 = por %p54, %p55
    %p57 = scmp.ne.s32.totalorder %s49, %s51
    %p58 = scmp.eq.s32.totalorder %s20, 1
    %p59 = por %p57, %p58
    %p60 = scmp.ne.s32.totalorder %s51, %s52
    %p61 = scmp.eq.s32.totalorder %s20, 0
    %p62 = por %p60, %p61
    %p63 = scmp.ne.s32.totalorder %s51, %s52
    %p64 = scmp.eq.s32.totalorder %s21, 1
    %p65 = por %p63, %p64
    %p67 = scmp.ne.s32.totalorder %s52, %s66
    %p68 = scmp.eq.s32.totalorder %s21, 0
    %p69 = por %p67, %p68
    %s71 = sadd.s32 %s70, 1
    %p74 = scmp.eq.s32.totalorder %s15, 1
    %p75 = scmp.ne.s32.totalorder %s70, %s72
    %p76 = scmp.eq.s32.totalorder %s15, 0
    %p77 = por %p75, %p76
    %p78 = scmp.ne.s32.totalorder %s70, %s72
    %p79 = scmp.eq.s32.totalorder %s20, 1
    %p80 = por %p78, %p79
    %p81 = scmp.ne.s32.totalorder %s72, %s73
    %p82 = scmp.eq.s32.totalorder %s20, 0
    %p83 = por %p81, %p82
    %p84 = scmp.ne.s32.totalorder %s72, %s73
    %p85 = scmp.eq.s32.totalorder %s21, 1
    %p86 = por %p84, %p85
    %p88 = scmp.ne.s32.totalorder %s73, %s87
    %p89 = scmp.eq.s32.totalorder %s21, 0
    %p90 = por %p88, %p89
    %s92 = sadd.s32 %s91, 1
    %p95 = scmp.eq.s32.totalorder %s15, 1
    %p96 = scmp.ne.s32.totalorder %s91, %s93
    %p97 = scmp.eq.s32.totalorder %s15, 0
    %p98 = por %p96, %p97
    %p99 = scmp.ne.s32.totalorder %s91, %s93
    %p100 = scmp.eq.s32.totalorder %s20, 1
    %p101 = por %p99, %p100
    %p102 = scmp.ne.s32.totalorder %s93, %s94
    %p103 = scmp.eq.s32.totalorder %s20, 0
    %p104 = por %p102, %p103
    %p105 = scmp.ne.s32.totalorder %s93, %s94
    %p106 = scmp.eq.s32.totalorder %s21, 1
    %p107 = por %p105, %p106
    %p109 = scmp.ne.s32.totalorder %s94, %s108
    %p110 = scmp.eq.s32.totalorder %s21, 0
    %p111 = por %p109, %p110
    %s113 = sadd.s32 %s112, 1
    %p116 = scmp.eq.s32.totalorder %s15, 1
    %p117 = scmp.ne.s32.totalorder %s112, %s114
    %p118 = scmp.eq.s32.totalorder %s15, 0
    %p119 = por %p117, %p118
    %p120 = scmp.ne.s32.totalorder %s112, %s114
    %p121 = scmp.eq.s32.totalorder %s20, 1
    %p122 = por %p120, %p121
    %p123 = scmp.ne.s32.totalorder %s114, %s115
    %p124 = scmp.eq.s32.totalorder %s20, 0
    %p125 = por %p123, %p124
    %p126 = scmp.ne.s32.totalorder %s114, %s115
    %p127 = scmp.eq.s32.totalorder %s21, 1
    %p128 = por %p126, %p127
    %p130 = scmp.ne.s32.totalorder %s115, %s129
    %p131 = scmp.eq.s32.totalorder %s21, 0
    %p132 = por %p130, %p131
    %s134 = sadd.s32 %s133, 1
    %p137 = scmp.eq.s32.totalorder %s15, 1
    %p138 = scmp.ne.s32.totalorder %s133, %s135
    %p139 = scmp.eq.s32.totalorder %s15, 0
    %p140 = por %p138, %p139
    %p141 = scmp.ne.s32.totalorder %s133, %s135
    %p142 = scmp.eq.s32.totalorder %s20, 1
    %p143 = por %p141, %p142
    %p144 = scmp.ne.s32.totalorder %s135, %s136
    %p145 = scmp.eq.s32.totalorder %s20, 0
    %p146 = por %p144, %p145
    %p147 = scmp.ne.s32.totalorder %s135, %s136
    %p148 = scmp.eq.s32.totalorder %s21, 1
    %p149 = por %p147, %p148
    %p151 = scmp.ne.s32.totalorder %s136, %s150
    %p152 = scmp.eq.s32.totalorder %s21, 0
    %p153 = por %p151, %p152
    %s155 = sadd.s32 %s154, 1
    %p158 = scmp.eq.s32.totalorder %s15, 1
    %p159 = scmp.ne.s32.totalorder %s154, %s156
    %p160 = scmp.eq.s32.totalorder %s15, 0
    %p161 = por %p159, %p160
    %p162 = scmp.ne.s32.totalorder %s154, %s156
    %p163 = scmp.eq.s32.totalorder %s20, 1
    %p164 = por %p162, %p163
    %p165 = scmp.ne.s32.totalorder %s156, %s157
    %p166 = scmp.eq.s32.totalorder %s20, 0
    %p167 = por %p165, %p166
    %p168 = scmp.ne.s32.totalorder %s156, %s157
    %p169 = scmp.eq.s32.totalorder %s21, 1
    %p170 = por %p168, %p169
    %p172 = scmp.ne.s32.totalorder %s157, %s171
    %p173 = scmp.eq.s32.totalorder %s21, 0
    %p174 = por %p172, %p173
    %s175 = ssub.s32 %s15, %s22
    %p176 = scmp.eq.s32.totalorder %s175, 0
    %s178 = sadd.s32 %s177, 1
    %s179 = scalar_select %p176, %s177, %s178
    %p182 = pneg %p176
    %p183 = scmp.eq.s32.totalorder %s15, 1
    %p184 = por %p182, %p183
    %p185 = scmp.ne.s32.totalorder %s177, %s180
    %p186 = scmp.eq.s32.totalorder %s15, 0
    %p187 = por %p185, %p186
    %p188 = scmp.ne.s32.totalorder %s177, %s180
    %p189 = scmp.eq.s32.totalorder %s20, 1
    %p190 = por %p188, %p189
    %p191 = scmp.ne.s32.totalorder %s180, %s181
    %p192 = scmp.eq.s32.totalorder %s20, 0
    %p193 = por %p191, %p192
    %p194 = scmp.ne.s32.totalorder %s180, %s181
    %p195 = scmp.eq.s32.totalorder %s21, 1
    %p196 = por %p194, %p195
    %p198 = scmp.ne.s32.totalorder %s181, %s197
    %p199 = scmp.eq.s32.totalorder %s21, 0
    %p200 = por %p198, %p199
    %p201 = scmp.le.s32.totalorder 1, %s15
    %p202 = scmp.lt.s32.totalorder %s15, 3
    %p203 = pnand %p201, %p202
    %p204 = pneg %p203
    // Predicated region
    $region9: #{feedforward_50_pallas.1} parent=5 // pred_check
      _
    $region10: #{feedforward_50_pallas.1} parent=5 // pred_check_branch
      %206 = sbr.rel (%p203) target = $region12
    $region11: #{feedforward_50_pallas.1} parent=5 // pred_region
      %s207 = ssub.s32 %s15, 1
      // Predicated region
      $region13: #{feedforward_50_pallas.1} parent=11 // pred_check
        %p208 = pneg %p62
      $region14: #{feedforward_50_pallas.1} parent=11 // pred_check_branch
        %210 = sbr.rel (%p208) target = $region16
      $region15: #{feedforward_50_pallas.1} parent=11 // pred_region
        _
      $region16: #{feedforward_50_pallas.1} parent=11 // pred_fallthru
        _
      // Predicated region
      $region17: #{feedforward_50_pallas.1} parent=11 // pred_check
        %p211 = pneg %p83
      $region18: #{feedforward_50_pallas.1} parent=11 // pred_check_branch
        %213 = sbr.rel (%p211) target = $region20
      $region19: #{feedforward_50_pallas.1} parent=11 // pred_region
        _
      $region20: #{feedforward_50_pallas.1} parent=11 // pred_fallthru
        _
      // Predicated region
      $region21: #{feedforward_50_pallas.1} parent=11 // pred_check
        %p214 = pneg %p104
      $region22: #{feedforward_50_pallas.1} parent=11 // pred_check_branch
        %216 = sbr.rel (%p214) target = $region24
      $region23: #{feedforward_50_pallas.1} parent=11 // pred_region
        _
      $region24: #{feedforward_50_pallas.1} parent=11 // pred_fallthru
        _
      // Predicated region
      $region25: #{feedforward_50_pallas.1} parent=11 // pred_check
        %p217 = pneg %p125
      $region26: #{feedforward_50_pallas.1} parent=11 // pred_check_branch
        %219 = sbr.rel (%p217) target = $region28
      $region27: #{feedforward_50_pallas.1} parent=11 // pred_region
        _
      $region28: #{feedforward_50_pallas.1} parent=11 // pred_fallthru
        _
      // Predicated region
      $region29: #{feedforward_50_pallas.1} parent=11 // pred_check
        %p220 = pneg %p146
      $region30: #{feedforward_50_pallas.1} parent=11 // pred_check_branch
        %222 = sbr.rel (%p220) target = $region32
      $region31: #{feedforward_50_pallas.1} parent=11 // pred_region
        _
      $region32: #{feedforward_50_pallas.1} parent=11 // pred_fallthru
        _
      // Predicated region
      $region33: #{feedforward_50_pallas.1} parent=11 // pred_check
        %p223 = pneg %p167
      $region34: #{feedforward_50_pallas.1} parent=11 // pred_check_branch
        %225 = sbr.rel (%p223) target = $region36
      $region35: #{feedforward_50_pallas.1} parent=11 // pred_region
        _
      $region36: #{feedforward_50_pallas.1} parent=11 // pred_fallthru
        _
    $region12: #{feedforward_50_pallas.1} parent=5 // pred_fallthru
      _
    %p226 = scmp.lt.s32.totalorder %s15, 2
    // Predicated region
    $region37: #{feedforward_50_pallas.1} parent=5 // pred_check
      %p227 = pneg %p226
    $region38: #{feedforward_50_pallas.1} parent=5 // pred_check_branch
      %229 = sbr.rel (%p227) target = $region40
    $region39: #{feedforward_50_pallas.1} parent=5 // pred_region
      // Predicated region
      $region41: #{feedforward_50_pallas.1} parent=39 // pred_check
        %p230 = pneg %p35
      $region42: #{feedforward_50_pallas.1} parent=39 // pred_check_branch
        %232 = sbr.rel (%p230) target = $region44
      $region43: #{feedforward_50_pallas.1} parent=39 // pred_region
        %s233 = smul.u32 2, %s15
        %p234 = scmp.lt.s32.totalorder %s233, 3
        %s235 = scalar_select %p234, %s233, 3
        %s236 = smul.addr %s235, 8
        %s237 = scalar_lea.vmem %s0, %s236
        %s238 = smul.u32 2, %s15
      $region44: #{feedforward_50_pallas.1} parent=39 // pred_fallthru
        _
    $region40: #{feedforward_50_pallas.1} parent=5 // pred_fallthru
      _
    %p239 = scmp.le.s32.totalorder 1, %s15
    %p240 = scmp.lt.s32.totalorder %s15, 3
    %p241 = pnand %p239, %p240
    %p242 = pneg %p241
    // Predicated region
    $region45: #{feedforward_50_pallas.1} parent=5 // pred_check
      _
    $region46: #{feedforward_50_pallas.1} parent=5 // pred_check_branch
      %244 = sbr.rel (%p241) target = $region48
    $region47: #{feedforward_50_pallas.1} parent=5 // pred_region
      %s245 = ssub.s32 %s15, 1
      %s246 = smul.u32 2, %s20
      %p247 = scmp.lt.s32.totalorder %s246, 3
      %s248 = scalar_select %p247, %s246, 3
      %s249 = smul.addr %s248, 8
      %s250 = scalar_lea.vmem %s0, %s249
      %p251 = pneg %p41
      %p252 = pneg %p38
      %p253 = pneg %p62
      %p254 = pneg %p59
      %p255 = pneg %p83
      %p256 = pneg %p80
      %p257 = pneg %p104
      %p258 = pneg %p101
      %p259 = pneg %p125
      %p260 = pneg %p122
      %p261 = pneg %p146
      %p262 = pneg %p143
      %p263 = pneg %p167
      %p264 = pneg %p164
      %p265 = pneg %p193
      %p266 = pneg %p190
      %s267 = smul.u32 2, %s20
      %p268 = scmp.lt.s32.totalorder %s267, 3
      %s269 = scalar_select %p268, %s267, 3
      %s270 = scalar_lea.vmem %s7, %s269
      %s271 = smul.u32 2, %s20
      %p272 = scmp.lt.s32.totalorder %s271, 3
      %s273 = scalar_select %p272, %s271, 3
      %s274 = smul.addr %s273, 8
      %s275 = scalar_lea.vmem %s0, %s274
      %s276 = smul.u32 2, %s20
      %s277 = smul.u32 2, %s20
      %p278 = scmp.lt.s32.totalorder %s277, 3
      %s279 = scalar_select %p278, %s277, 3
      %s280 = scalar_lea.vmem %s7, %s279
      %s281 = smul.u32 2, %s20
      %v283 = vld [vmem:[%s275] sm:$0xff]
      %v284 = vld [vmem:[%s275 + $0x8] sm:$0xff]
      %v285 = vpack.c.bf16 %v284, %v283
      %v286 = vld [vmem:[%s1] sm:$0xf]
      %v287 = vld [vmem:[%s1 + $0x4] sm:$0xf]
      %v288 = vld [vmem:[%s1 + $0x8] sm:$0xf]
      %v289 = vld [vmem:[%s1 + $0xc] sm:$0xf]
      %v290 = vld [vmem:[%s1 + $0x10] sm:$0xf]
      %v291 = vld [vmem:[%s1 + $0x14] sm:$0xf]
      %v292 = vld [vmem:[%s1 + $0x18] sm:$0xf]
      %v293 = vld [vmem:[%s1 + $0x1c] sm:$0xf]
      %v294 = vld [vmem:[%s2] sm:$0xff]
      %v295 = vld [vmem:[%s2 + $0x8] sm:$0xff]
      %v296 = vld [vmem:[%s2 + $0x10] sm:$0xff]
      %v297 = vld [vmem:[%s2 + $0x18] sm:$0xff]
      %v298 = vld [vmem:[%s2 + $0x20] sm:$0xff]
      %v299 = vld [vmem:[%s2 + $0x28] sm:$0xff]
      %v300 = vld [vmem:[%s2 + $0x30] sm:$0xff]
      %v301 = vld [vmem:[%s2 + $0x38] sm:$0xff]
      %303 = vset.pattern.permute.xlu0 0
      %304 = vperm.xlu0 %303, %v294
      %v305 = vpop.permute.xlu0 %304
      %308 = vset.pattern.permute.xlu0 0
      %309 = vperm.xlu0 %308, %v295
      %v310 = vpop.permute.xlu0 %309
      %313 = vset.pattern.permute.xlu0 0
      %314 = vperm.xlu0 %313, %v296
      %v315 = vpop.permute.xlu0 %314
      %318 = vset.pattern.permute.xlu0 0
      %319 = vperm.xlu0 %318, %v297
      %v320 = vpop.permute.xlu0 %319
      %323 = vset.pattern.permute.xlu0 0
      %324 = vperm.xlu0 %323, %v298
      %v325 = vpop.permute.xlu0 %324
      %328 = vset.pattern.permute.xlu0 0
      %329 = vperm.xlu0 %328, %v299
      %v330 = vpop.permute.xlu0 %329
      %333 = vset.pattern.permute.xlu0 0
      %334 = vperm.xlu0 %333, %v300
      %v335 = vpop.permute.xlu0 %334
      %338 = vset.pattern.permute.xlu0 0
      %339 = vperm.xlu0 %338, %v301
      %v340 = vpop.permute.xlu0 %339
      %v350 = vunpack.c.l.b16 %v286
      %v351 = vunpack.c.l.b16 %v287
      %v352 = vunpack.c.l.b16 %v288
      %v353 = vunpack.c.l.b16 %v289
      %v354 = vunpack.c.l.b16 %v290
      %v355 = vunpack.c.l.b16 %v291
      %v356 = vunpack.c.l.b16 %v292
      %v357 = vunpack.c.l.b16 %v293
      %v358 = vpack.c.b16 %v351, %v350
      %v359 = vpack.c.b16 %v353, %v352
      %v360 = vpack.c.b16 %v355, %v354
      %v361 = vpack.c.b16 %v357, %v356
      %vm362 = vcmask 64512
      %v364 = vsel %vm362, %v358, 0
      %v367 = vsel %vm362, %v359, 0
      %v370 = vsel %vm362, %v360, 0
      %v373 = vsel %vm362, %v361, 0
      %vm375 = vcmask 1043456
      %v377 = vsel %vm375, %v285, 0
      %379 = vmatpush.bf16.msra.mxu0 0
      %380 = vmatpush.bf16.msra.mxu0 0
      %381 = vmatpush.bf16.msra.mxu0 0
      %382 = vmatpush.bf16.msra.mxu0 0
      %383 = vmatpush.bf16.msra.mxu0 0
      %384 = vmatpush.bf16.msra.mxu0 0
      %385 = vmatpush.bf16.msra.mxu0 0
      %386 = vmatpush.bf16.msra.mxu0 %v377
      %387 = vmatmul.bf16.gmra.mxu0 %v364
      %v388 = vpop.f32.mrf.mxu0
      %v389 = vadd.f32 %v305, %v388
      %v390 = vpop.f32.mrf.mxu0
      %v391 = vadd.f32 %v310, %v390
      %392 = vmatmul.bf16.gmra.mxu0 %v367
      %v393 = vpop.f32.mrf.mxu0
      %v394 = vadd.f32 %v315, %v393
      %v395 = vpop.f32.mrf.mxu0
      %v396 = vadd.f32 %v320, %v395
      %397 = vmatmul.bf16.gmra.mxu0 %v370
      %v398 = vpop.f32.mrf.mxu0
      %v399 = vadd.f32 %v325, %v398
      %v400 = vpop.f32.mrf.mxu0
      %v401 = vadd.f32 %v330, %v400
      %402 = vmatmul.bf16.gmra.mxu0 %v373
      %v403 = vpop.f32.mrf.mxu0
      %v404 = vadd.f32 %v335, %v403
      %v405 = vpop.f32.mrf.mxu0
      %v406 = vadd.f32 %v340, %v405
      %407 = vdwg.mxu0
      %v408 = vmax.f32 %v389, 0.0
      %v409 = vmax.f32 %v391, 0.0
      %v410 = vmax.f32 %v394, 0.0
      %v411 = vmax.f32 %v396, 0.0
      %v412 = vmax.f32 %v399, 0.0
      %v413 = vmax.f32 %v401, 0.0
      %v414 = vmax.f32 %v404, 0.0
      %v415 = vmax.f32 %v406, 0.0
      %v417 = vunpack.c.h.b16 %v285
      %v418 = vpack.c.b16 %v417, %v417
      %v420 = vsel %vm375, %v418, 0
      %422 = vmatpush.bf16.msra.mxu0 0
      %423 = vmatpush.bf16.msra.mxu0 0
      %424 = vmatpush.bf16.msra.mxu0 0
      %425 = vmatpush.bf16.msra.mxu0 0
      %426 = vmatpush.bf16.msra.mxu0 0
      %427 = vmatpush.bf16.msra.mxu0 0
      %428 = vmatpush.bf16.msra.mxu0 0
      %429 = vmatpush.bf16.msra.mxu0 %v420
      %430 = vmatmul.bf16.gmra.mxu0 %v364
      %v431 = vpop.f32.mrf.mxu0
      %v432 = vadd.f32 %v305, %v431
      %v433 = vpop.f32.mrf.mxu0
      %v434 = vadd.f32 %v310, %v433
      %435 = vmatmul.bf16.gmra.mxu0 %v367
      %v436 = vpop.f32.mrf.mxu0
      %v437 = vadd.f32 %v315, %v436
      %v438 = vpop.f32.mrf.mxu0
      %v439 = vadd.f32 %v320, %v438
      %440 = vmatmul.bf16.gmra.mxu0 %v370
      %v441 = vpop.f32.mrf.mxu0
      %v442 = vadd.f32 %v325, %v441
      %v443 = vpop.f32.mrf.mxu0
      %v444 = vadd.f32 %v330, %v443
      %445 = vmatmul.bf16.gmra.mxu0 %v373
      %v446 = vpop.f32.mrf.mxu0
      %v447 = vadd.f32 %v335, %v446
      %v448 = vpop.f32.mrf.mxu0
      %v449 = vadd.f32 %v340, %v448
      %450 = vdwg.mxu0
      %v451 = vmax.f32 %v432, 0.0
      %v452 = vmax.f32 %v434, 0.0
      %v453 = vmax.f32 %v437, 0.0
      %v454 = vmax.f32 %v439, 0.0
      %v455 = vmax.f32 %v442, 0.0
      %v456 = vmax.f32 %v444, 0.0
      %v457 = vmax.f32 %v447, 0.0
      %v458 = vmax.f32 %v449, 0.0
      %v459 = vld [vmem:[%s3] sm:$0xf]
      %v460 = vld [vmem:[%s3 + $0x4] sm:$0xf]
      %v461 = vld [vmem:[%s3 + $0x8] sm:$0xf]
      %v462 = vld [vmem:[%s3 + $0xc] sm:$0xf]
      %v463 = vld [vmem:[%s3 + $0x10] sm:$0xf]
      %v464 = vld [vmem:[%s3 + $0x14] sm:$0xf]
      %v465 = vld [vmem:[%s3 + $0x18] sm:$0xf]
      %v466 = vld [vmem:[%s3 + $0x1c] sm:$0xf]
      %v467 = vld [vmem:[%s4] sm:$0xff]
      %v468 = vld [vmem:[%s4 + $0x8] sm:$0xff]
      %v469 = vld [vmem:[%s4 + $0x10] sm:$0xff]
      %v470 = vld [vmem:[%s4 + $0x18] sm:$0xff]
      %v471 = vld [vmem:[%s4 + $0x20] sm:$0xff]
      %v472 = vld [vmem:[%s4 + $0x28] sm:$0xff]
      %v473 = vld [vmem:[%s4 + $0x30] sm:$0xff]
      %v474 = vld [vmem:[%s4 + $0x38] sm:$0xff]
      %v475 = vpack.c.bf16 %v409, %v408
      %v476 = vpack.c.bf16 %v411, %v410
      %v477 = vpack.c.bf16 %v413, %v412
      %v478 = vpack.c.bf16 %v415, %v414
      %v479 = vpack.c.bf16 %v452, %v451
      %v480 = vpack.c.bf16 %v454, %v453
      %v481 = vpack.c.bf16 %v456, %v455
      %v482 = vpack.c.bf16 %v458, %v457
      %484 = vset.pattern.permute.xlu0 0
      %485 = vperm.xlu0 %484, %v467
      %v486 = vpop.permute.xlu0 %485
      %489 = vset.pattern.permute.xlu0 0
      %490 = vperm.xlu0 %489, %v468
      %v491 = vpop.permute.xlu0 %490
      %494 = vset.pattern.permute.xlu0 0
      %495 = vperm.xlu0 %494, %v469
      %v496 = vpop.permute.xlu0 %495
      %499 = vset.pattern.permute.xlu0 0
      %500 = vperm.xlu0 %499, %v470
      %v501 = vpop.permute.xlu0 %500
      %504 = vset.pattern.permute.xlu0 0
      %505 = vperm.xlu0 %504, %v471
      %v506 = vpop.permute.xlu0 %505
      %509 = vset.pattern.permute.xlu0 0
      %510 = vperm.xlu0 %509, %v472
      %v511 = vpop.permute.xlu0 %510
      %514 = vset.pattern.permute.xlu0 0
      %515 = vperm.xlu0 %514, %v473
      %v516 = vpop.permute.xlu0 %515
      %519 = vset.pattern.permute.xlu0 0
      %520 = vperm.xlu0 %519, %v474
      %v521 = vpop.permute.xlu0 %520
      %v531 = vunpack.c.l.b16 %v459
      %v532 = vunpack.c.l.b16 %v460
      %v533 = vunpack.c.l.b16 %v461
      %v534 = vunpack.c.l.b16 %v462
      %v535 = vunpack.c.l.b16 %v463
      %v536 = vunpack.c.l.b16 %v464
      %v537 = vunpack.c.l.b16 %v465
      %v538 = vunpack.c.l.b16 %v466
      %v539 = vpack.c.b16 %v532, %v531
      %v540 = vpack.c.b16 %v534, %v533
      %v541 = vpack.c.b16 %v536, %v535
      %v542 = vpack.c.b16 %v538, %v537
      %vm543 = vcmask 523264
      %v545 = vsel %vm543, %v539, 0
      %v548 = vsel %vm543, %v540, 0
      %v551 = vsel %vm543, %v541, 0
      %v554 = vsel %vm543, %v542, 0
      %556 = vmatpush.bf16.msra.mxu0 0
      %557 = vmatpush.bf16.msra.mxu0 0
      %558 = vmatpush.bf16.msra.mxu0 0
      %559 = vmatpush.bf16.msra.mxu0 0
      %560 = vmatpush.bf16.msra.mxu0 %v478
      %561 = vmatpush.bf16.msra.mxu0 %v477
      %562 = vmatpush.bf16.msra.mxu0 %v476
      %563 = vmatpush.bf16.msra.mxu0 %v475
      %564 = vmatmul.bf16.gmra.mxu0 %v545
      %v565 = vpop.f32.mrf.mxu0
      %v566 = vadd.f32 %v486, %v565
      %v567 = vpop.f32.mrf.mxu0
      %v568 = vadd.f32 %v491, %v567
      %569 = vmatmul.bf16.gmra.mxu0 %v548
      %v570 = vpop.f32.mrf.mxu0
      %v571 = vadd.f32 %v496, %v570
      %v572 = vpop.f32.mrf.mxu0
      %v573 = vadd.f32 %v501, %v572
      %574 = vmatmul.bf16.gmra.mxu0 %v551
      %v575 = vpop.f32.mrf.mxu0
      %v576 = vadd.f32 %v506, %v575
      %v577 = vpop.f32.mrf.mxu0
      %v578 = vadd.f32 %v511, %v577
      %579 = vmatmul.bf16.gmra.mxu0 %v554
      %v580 = vpop.f32.mrf.mxu0
      %v581 = vadd.f32 %v516, %v580
      %v582 = vpop.f32.mrf.mxu0
      %v583 = vadd.f32 %v521, %v582
      %584 = vdwg.mxu0
      %v585 = vmax.f32 %v566, 0.0
      %v586 = vmax.f32 %v568, 0.0
      %v587 = vmax.f32 %v571, 0.0
      %v588 = vmax.f32 %v573, 0.0
      %v589 = vmax.f32 %v576, 0.0
      %v590 = vmax.f32 %v578, 0.0
      %v591 = vmax.f32 %v581, 0.0
      %v592 = vmax.f32 %v583, 0.0
      %593 = vmatpush.bf16.msra.mxu0 0
      %594 = vmatpush.bf16.msra.mxu0 0
      %595 = vmatpush.bf16.msra.mxu0 0
      %596 = vmatpush.bf16.msra.mxu0 0
      %597 = vmatpush.bf16.msra.mxu0 %v482
      %598 = vmatpush.bf16.msra.mxu0 %v481
      %599 = vmatpush.bf16.msra.mxu0 %v480
      %600 = vmatpush.bf16.msra.mxu0 %v479
      %601 = vmatmul.bf16.gmra.mxu0 %v545
      %v602 = vpop.f32.mrf.mxu0
      %v603 = vadd.f32 %v486, %v602
      %v604 = vpop.f32.mrf.mxu0
      %v605 = vadd.f32 %v491, %v604
      %606 = vmatmul.bf16.gmra.mxu0 %v548
      %v607 = vpop.f32.mrf.mxu0
      %v608 = vadd.f32 %v496, %v607
      %v609 = vpop.f32.mrf.mxu0
      %v610 = vadd.f32 %v501, %v609
      %611 = vmatmul.bf16.gmra.mxu0 %v551
      %v612 = vpop.f32.mrf.mxu0
      %v613 = vadd.f32 %v506, %v612
      %v614 = vpop.f32.mrf.mxu0
      %v615 = vadd.f32 %v511, %v614
      %616 = vmatmul.bf16.gmra.mxu0 %v554
      %v617 = vpop.f32.mrf.mxu0
      %v618 = vadd.f32 %v516, %v617
      %v619 = vpop.f32.mrf.mxu0
      %v620 = vadd.f32 %v521, %v619
      %621 = vdwg.mxu0
      %v622 = vmax.f32 %v603, 0.0
      %v623 = vmax.f32 %v605, 0.0
      %v624 = vmax.f32 %v608, 0.0
      %v625 = vmax.f32 %v610, 0.0
      %v626 = vmax.f32 %v613, 0.0
      %v627 = vmax.f32 %v615, 0.0
      %v628 = vmax.f32 %v618, 0.0
      %v629 = vmax.f32 %v620, 0.0
      %s630 = scalar_lea.vmem %s3, 32
      %v631 = vld [vmem:[%s630] sm:$0xf]
      %v632 = vld [vmem:[%s630 + $0x4] sm:$0xf]
      %v633 = vld [vmem:[%s630 + $0x8] sm:$0xf]
      %v634 = vld [vmem:[%s630 + $0xc] sm:$0xf]
      %v635 = vld [vmem:[%s630 + $0x10] sm:$0xf]
      %v636 = vld [vmem:[%s630 + $0x14] sm:$0xf]
      %v637 = vld [vmem:[%s630 + $0x18] sm:$0xf]
      %v638 = vld [vmem:[%s630 + $0x1c] sm:$0xf]
      %s639 = scalar_lea.vmem %s4, 64
      %v640 = vld [vmem:[%s639] sm:$0xff]
      %v641 = vld [vmem:[%s639 + $0x8] sm:$0xff]
      %v642 = vld [vmem:[%s639 + $0x10] sm:$0xff]
      %v643 = vld [vmem:[%s639 + $0x18] sm:$0xff]
      %v644 = vld [vmem:[%s639 + $0x20] sm:$0xff]
      %v645 = vld [vmem:[%s639 + $0x28] sm:$0xff]
      %v646 = vld [vmem:[%s639 + $0x30] sm:$0xff]
      %v647 = vld [vmem:[%s639 + $0x38] sm:$0xff]
      %v648 = vpack.c.bf16 %v586, %v585
      %v649 = vpack.c.bf16 %v588, %v587
      %v650 = vpack.c.bf16 %v590, %v589
      %v651 = vpack.c.bf16 %v592, %v591
      %v652 = vpack.c.bf16 %v623, %v622
      %v653 = vpack.c.bf16 %v625, %v624
      %v654 = vpack.c.bf16 %v627, %v626
      %v655 = vpack.c.bf16 %v629, %v628
      %657 = vset.pattern.permute.xlu0 0
      %658 = vperm.xlu0 %657, %v640
      %v659 = vpop.permute.xlu0 %658
      %662 = vset.pattern.permute.xlu0 0
      %663 = vperm.xlu0 %662, %v641
      %v664 = vpop.permute.xlu0 %663
      %667 = vset.pattern.permute.xlu0 0
      %668 = vperm.xlu0 %667, %v642
      %v669 = vpop.permute.xlu0 %668
      %672 = vset.pattern.permute.xlu0 0
      %673 = vperm.xlu0 %672, %v643
      %v674 = vpop.permute.xlu0 %673
      %677 = vset.pattern.permute.xlu0 0
      %678 = vperm.xlu0 %677, %v644
      %v679 = vpop.permute.xlu0 %678
      %682 = vset.pattern.permute.xlu0 0
      %683 = vperm.xlu0 %682, %v645
      %v684 = vpop.permute.xlu0 %683
      %687 = vset.pattern.permute.xlu0 0
      %688 = vperm.xlu0 %687, %v646
      %v689 = vpop.permute.xlu0 %688
      %692 = vset.pattern.permute.xlu0 0
      %693 = vperm.xlu0 %692, %v647
      %v694 = vpop.permute.xlu0 %693
      %v704 = vunpack.c.l.b16 %v631
      %v705 = vunpack.c.l.b16 %v632
      %v706 = vunpack.c.l.b16 %v633
      %v707 = vunpack.c.l.b16 %v634
      %v708 = vunpack.c.l.b16 %v635
      %v709 = vunpack.c.l.b16 %v636
      %v710 = vunpack.c.l.b16 %v637
      %v711 = vunpack.c.l.b16 %v638
      %v712 = vpack.c.b16 %v705, %v704
      %v713 = vpack.c.b16 %v707, %v706
      %v714 = vpack.c.b16 %v709, %v708
      %v715 = vpack.c.b16 %v711, %v710
      %v717 = vsel %vm543, %v712, 0
      %v720 = vsel %vm543, %v713, 0
      %v723 = vsel %vm543, %v714, 0
      %v726 = vsel %vm543, %v715, 0
      %728 = vmatpush.bf16.msra.mxu0 0
      %729 = vmatpush.bf16.msra.mxu0 0
      %730 = vmatpush.bf16.msra.mxu0 0
      %731 = vmatpush.bf16.msra.mxu0 0
      %732 = vmatpush.bf16.msra.mxu0 %v651
      %733 = vmatpush.bf16.msra.mxu0 %v650
      %734 = vmatpush.bf16.msra.mxu0 %v649
      %735 = vmatpush.bf16.msra.mxu0 %v648
      %736 = vmatmul.bf16.gmra.mxu0 %v717
      %v737 = vpop.f32.mrf.mxu0
      %v738 = vadd.f32 %v659, %v737
      %v739 = vpop.f32.mrf.mxu0
      %v740 = vadd.f32 %v664, %v739
      %741 = vmatmul.bf16.gmra.mxu0 %v720
      %v742 = vpop.f32.mrf.mxu0
      %v743 = vadd.f32 %v669, %v742
      %v744 = vpop.f32.mrf.mxu0
      %v745 = vadd.f32 %v674, %v744
      %746 = vmatmul.bf16.gmra.mxu0 %v723
      %v747 = vpop.f32.mrf.mxu0
      %v748 = vadd.f32 %v679, %v747
      %v749 = vpop.f32.mrf.mxu0
      %v750 = vadd.f32 %v684, %v749
      %751 = vmatmul.bf16.gmra.mxu0 %v726
      %v752 = vpop.f32.mrf.mxu0
      %v753 = vadd.f32 %v689, %v752
      %v754 = vpop.f32.mrf.mxu0
      %v755 = vadd.f32 %v694, %v754
      %756 = vdwg.mxu0
      %v757 = vmax.f32 %v738, 0.0
      %v758 = vmax.f32 %v740, 0.0
      %v759 = vmax.f32 %v743, 0.0
      %v760 = vmax.f32 %v745, 0.0
      %v761 = vmax.f32 %v748, 0.0
      %v762 = vmax.f32 %v750, 0.0
      %v763 = vmax.f32 %v753, 0.0
      %v764 = vmax.f32 %v755, 0.0
      %765 = vmatpush.bf16.msra.mxu0 0
      %766 = vmatpush.bf16.msra.mxu0 0
      %767 = vmatpush.bf16.msra.mxu0 0
      %768 = vmatpush.bf16.msra.mxu0 0
      %769 = vmatpush.bf16.msra.mxu0 %v655
      %770 = vmatpush.bf16.msra.mxu0 %v654
      %771 = vmatpush.bf16.msra.mxu0 %v653
      %772 = vmatpush.bf16.msra.mxu0 %v652
      %773 = vmatmul.bf16.gmra.mxu0 %v717
      %v774 = vpop.f32.mrf.mxu0
      %v775 = vadd.f32 %v659, %v774
      %v776 = vpop.f32.mrf.mxu0
      %v777 = vadd.f32 %v664, %v776
      %778 = vmatmul.bf16.gmra.mxu0 %v720
      %v779 = vpop.f32.mrf.mxu0
      %v780 = vadd.f32 %v669, %v779
      %v781 = vpop.f32.mrf.mxu0
      %v782 = vadd.f32 %v674, %v781
      %783 = vmatmul.bf16.gmra.mxu0 %v723
      %v784 = vpop.f32.mrf.mxu0
      %v785 = vadd.f32 %v679, %v784
      %v786 = vpop.f32.mrf.mxu0
      %v787 = vadd.f32 %v684, %v786
      %788 = vmatmul.bf16.gmra.mxu0 %v726
      %v789 = vpop.f32.mrf.mxu0
      %v790 = vadd.f32 %v689, %v789
      %v791 = vpop.f32.mrf.mxu0
      %v792 = vadd.f32 %v694, %v791
      %793 = vdwg.mxu0
      %v794 = vmax.f32 %v775, 0.0
      %v795 = vmax.f32 %v777, 0.0
      %v796 = vmax.f32 %v780, 0.0
      %v797 = vmax.f32 %v782, 0.0
      %v798 = vmax.f32 %v785, 0.0
      %v799 = vmax.f32 %v787, 0.0
      %v800 = vmax.f32 %v790, 0.0
      %v801 = vmax.f32 %v792, 0.0
      %s802 = scalar_lea.vmem %s3, 64
      %v803 = vld [vmem:[%s802] sm:$0xf]
      %v804 = vld [vmem:[%s802 + $0x4] sm:$0xf]
      %v805 = vld [vmem:[%s802 + $0x8] sm:$0xf]
      %v806 = vld [vmem:[%s802 + $0xc] sm:$0xf]
      %v807 = vld [vmem:[%s802 + $0x10] sm:$0xf]
      %v808 = vld [vmem:[%s802 + $0x14] sm:$0xf]
      %v809 = vld [vmem:[%s802 + $0x18] sm:$0xf]
      %v810 = vld [vmem:[%s802 + $0x1c] sm:$0xf]
      %s811 = scalar_lea.vmem %s4, 128
      %v812 = vld [vmem:[%s811] sm:$0xff]
      %v813 = vld [vmem:[%s811 + $0x8] sm:$0xff]
      %v814 = vld [vmem:[%s811 + $0x10] sm:$0xff]
      %v815 = vld [vmem:[%s811 + $0x18] sm:$0xff]
      %v816 = vld [vmem:[%s811 + $0x20] sm:$0xff]
      %v817 = vld [vmem:[%s811 + $0x28] sm:$0xff]
      %v818 = vld [vmem:[%s811 + $0x30] sm:$0xff]
      %v819 = vld [vmem:[%s811 + $0x38] sm:$0xff]
      %v820 = vpack.c.bf16 %v758, %v757
      %v821 = vpack.c.bf16 %v760, %v759
      %v822 = vpack.c.bf16 %v762, %v761
      %v823 = vpack.c.bf16 %v764, %v763
      %v824 = vpack.c.bf16 %v795, %v794
      %v825 = vpack.c.bf16 %v797, %v796
      %v826 = vpack.c.bf16 %v799, %v798
      %v827 = vpack.c.bf16 %v801, %v800
      %829 = vset.pattern.permute.xlu0 0
      %830 = vperm.xlu0 %829, %v812
      %v831 = vpop.permute.xlu0 %830
      %834 = vset.pattern.permute.xlu0 0
      %835 = vperm.xlu0 %834, %v813
      %v836 = vpop.permute.xlu0 %835
      %839 = vset.pattern.permute.xlu0 0
      %840 = vperm.xlu0 %839, %v814
      %v841 = vpop.permute.xlu0 %840
      %844 = vset.pattern.permute.xlu0 0
      %845 = vperm.xlu0 %844, %v815
      %v846 = vpop.permute.xlu0 %845
      %849 = vset.pattern.permute.xlu0 0
      %850 = vperm.xlu0 %849, %v816
      %v851 = vpop.permute.xlu0 %850
      %854 = vset.pattern.permute.xlu0 0
      %855 = vperm.xlu0 %854, %v817
      %v856 = vpop.permute.xlu0 %855
      %859 = vset.pattern.permute.xlu0 0
      %860 = vperm.xlu0 %859, %v818
      %v861 = vpop.permute.xlu0 %860
      %864 = vset.pattern.permute.xlu0 0
      %865 = vperm.xlu0 %864, %v819
      %v866 = vpop.permute.xlu0 %865
      %v876 = vunpack.c.l.b16 %v803
      %v877 = vunpack.c.l.b16 %v804
      %v878 = vunpack.c.l.b16 %v805
      %v879 = vunpack.c.l.b16 %v806
      %v880 = vunpack.c.l.b16 %v807
      %v881 = vunpack.c.l.b16 %v808
      %v882 = vunpack.c.l.b16 %v809
      %v883 = vunpack.c.l.b16 %v810
      %v884 = vpack.c.b16 %v877, %v876
      %v885 = vpack.c.b16 %v879, %v878
      %v886 = vpack.c.b16 %v881, %v880
      %v887 = vpack.c.b16 %v883, %v882
      %v889 = vsel %vm543, %v884, 0
      %v892 = vsel %vm543, %v885, 0
      %v895 = vsel %vm543, %v886, 0
      %v898 = vsel %vm543, %v887, 0
      %900 = vmatpush.bf16.msra.mxu0 0
      %901 = vmatpush.bf16.msra.mxu0 0
      %902 = vmatpush.bf16.msra.mxu0 0
      %903 = vmatpush.bf16.msra.mxu0 0
      %904 = vmatpush.bf16.msra.mxu0 %v823
      %905 = vmatpush.bf16.msra.mxu0 %v822
      %906 = vmatpush.bf16.msra.mxu0 %v821
      %907 = vmatpush.bf16.msra.mxu0 %v820
      %908 = vmatmul.bf16.gmra.mxu0 %v889
      %v909 = vpop.f32.mrf.mxu0
      %v910 = vadd.f32 %v831, %v909
      %v911 = vpop.f32.mrf.mxu0
      %v912 = vadd.f32 %v836, %v911
      %913 = vmatmul.bf16.gmra.mxu0 %v892
      %v914 = vpop.f32.mrf.mxu0
      %v915 = vadd.f32 %v841, %v914
      %v916 = vpop.f32.mrf.mxu0
      %v917 = vadd.f32 %v846, %v916
      %918 = vmatmul.bf16.gmra.mxu0 %v895
      %v919 = vpop.f32.mrf.mxu0
      %v920 = vadd.f32 %v851, %v919
      %v921 = vpop.f32.mrf.mxu0
      %v922 = vadd.f32 %v856, %v921
      %923 = vmatmul.bf16.gmra.mxu0 %v898
      %v924 = vpop.f32.mrf.mxu0
      %v925 = vadd.f32 %v861, %v924
      %v926 = vpop.f32.mrf.mxu0
      %v927 = vadd.f32 %v866, %v926
      %928 = vdwg.mxu0
      %v929 = vmax.f32 %v910, 0.0
      %v930 = vmax.f32 %v912, 0.0
      %v931 = vmax.f32 %v915, 0.0
      %v932 = vmax.f32 %v917, 0.0
      %v933 = vmax.f32 %v920, 0.0
      %v934 = vmax.f32 %v922, 0.0
      %v935 = vmax.f32 %v925, 0.0
      %v936 = vmax.f32 %v927, 0.0
      %937 = vmatpush.bf16.msra.mxu0 0
      %938 = vmatpush.bf16.msra.mxu0 0
      %939 = vmatpush.bf16.msra.mxu0 0
      %940 = vmatpush.bf16.msra.mxu0 0
      %941 = vmatpush.bf16.msra.mxu0 %v827
      %942 = vmatpush.bf16.msra.mxu0 %v826
      %943 = vmatpush.bf16.msra.mxu0 %v825
      %944 = vmatpush.bf16.msra.mxu0 %v824
      %945 = vmatmul.bf16.gmra.mxu0 %v889
      %v946 = vpop.f32.mrf.mxu0
      %v947 = vadd.f32 %v831, %v946
      %v948 = vpop.f32.mrf.mxu0
      %v949 = vadd.f32 %v836, %v948
      %950 = vmatmul.bf16.gmra.mxu0 %v892
      %v951 = vpop.f32.mrf.mxu0
      %v952 = vadd.f32 %v841, %v951
      %v953 = vpop.f32.mrf.mxu0
      %v954 = vadd.f32 %v846, %v953
      %955 = vmatmul.bf16.gmra.mxu0 %v895
      %v956 = vpop.f32.mrf.mxu0
      %v957 = vadd.f32 %v851, %v956
      %v958 = vpop.f32.mrf.mxu0
      %v959 = vadd.f32 %v856, %v958
      %960 = vmatmul.bf16.gmra.mxu0 %v898
      %v961 = vpop.f32.mrf.mxu0
      %v962 = vadd.f32 %v861, %v961
      %v963 = vpop.f32.mrf.mxu0
      %v964 = vadd.f32 %v866, %v963
      %965 = vdwg.mxu0
      %v966 = vmax.f32 %v947, 0.0
      %v967 = vmax.f32 %v949, 0.0
      %v968 = vmax.f32 %v952, 0.0
      %v969 = vmax.f32 %v954, 0.0
      %v970 = vmax.f32 %v957, 0.0
      %v971 = vmax.f32 %v959, 0.0
      %v972 = vmax.f32 %v962, 0.0
      %v973 = vmax.f32 %v964, 0.0
      %s974 = scalar_lea.vmem %s3, 96
      %v975 = vld [vmem:[%s974] sm:$0xf]
      %v976 = vld [vmem:[%s974 + $0x4] sm:$0xf]
      %v977 = vld [vmem:[%s974 + $0x8] sm:$0xf]
      %v978 = vld [vmem:[%s974 + $0xc] sm:$0xf]
      %v979 = vld [vmem:[%s974 + $0x10] sm:$0xf]
      %v980 = vld [vmem:[%s974 + $0x14] sm:$0xf]
      %v981 = vld [vmem:[%s974 + $0x18] sm:$0xf]
      %v982 = vld [vmem:[%s974 + $0x1c] sm:$0xf]
      %s983 = scalar_lea.vmem %s4, 192
      %v984 = vld [vmem:[%s983] sm:$0xff]
      %v985 = vld [vmem:[%s983 + $0x8] sm:$0xff]
      %v986 = vld [vmem:[%s983 + $0x10] sm:$0xff]
      %v987 = vld [vmem:[%s983 + $0x18] sm:$0xff]
      %v988 = vld [vmem:[%s983 + $0x20] sm:$0xff]
      %v989 = vld [vmem:[%s983 + $0x28] sm:$0xff]
      %v990 = vld [vmem:[%s983 + $0x30] sm:$0xff]
      %v991 = vld [vmem:[%s983 + $0x38] sm:$0xff]
      %v992 = vpack.c.bf16 %v930, %v929
      %v993 = vpack.c.bf16 %v932, %v931
      %v994 = vpack.c.bf16 %v934, %v933
      %v995 = vpack.c.bf16 %v936, %v935
      %v996 = vpack.c.bf16 %v967, %v966
      %v997 = vpack.c.bf16 %v969, %v968
      %v998 = vpack.c.bf16 %v971, %v970
      %v999 = vpack.c.bf16 %v973, %v972
      %1001 = vset.pattern.permute.xlu0 0
      %1002 = vperm.xlu0 %1001, %v984
      %v1003 = vpop.permute.xlu0 %1002
      %1006 = vset.pattern.permute.xlu0 0
      %1007 = vperm.xlu0 %1006, %v985
      %v1008 = vpop.permute.xlu0 %1007
      %1011 = vset.pattern.permute.xlu0 0
      %1012 = vperm.xlu0 %1011, %v986
      %v1013 = vpop.permute.xlu0 %1012
      %1016 = vset.pattern.permute.xlu0 0
      %1017 = vperm.xlu0 %1016, %v987
      %v1018 = vpop.permute.xlu0 %1017
      %1021 = vset.pattern.permute.xlu0 0
      %1022 = vperm.xlu0 %1021, %v988
      %v1023 = vpop.permute.xlu0 %1022
      %1026 = vset.pattern.permute.xlu0 0
      %1027 = vperm.xlu0 %1026, %v989
      %v1028 = vpop.permute.xlu0 %1027
      %1031 = vset.pattern.permute.xlu0 0
      %1032 = vperm.xlu0 %1031, %v990
      %v1033 = vpop.permute.xlu0 %1032
      %1036 = vset.pattern.permute.xlu0 0
      %1037 = vperm.xlu0 %1036, %v991
      %v1038 = vpop.permute.xlu0 %1037
      %v1048 = vunpack.c.l.b16 %v975
      %v1049 = vunpack.c.l.b16 %v976
      %v1050 = vunpack.c.l.b16 %v977
      %v1051 = vunpack.c.l.b16 %v978
      %v1052 = vunpack.c.l.b16 %v979
      %v1053 = vunpack.c.l.b16 %v980
      %v1054 = vunpack.c.l.b16 %v981
      %v1055 = vunpack.c.l.b16 %v982
      %v1056 = vpack.c.b16 %v1049, %v1048
      %v1057 = vpack.c.b16 %v1051, %v1050
      %v1058 = vpack.c.b16 %v1053, %v1052
      %v1059 = vpack.c.b16 %v1055, %v1054
      %v1061 = vsel %vm543, %v1056, 0
      %v1064 = vsel %vm543, %v1057, 0
      %v1067 = vsel %vm543, %v1058, 0
      %v1070 = vsel %vm543, %v1059, 0
      %1072 = vmatpush.bf16.msra.mxu0 0
      %1073 = vmatpush.bf16.msra.mxu0 0
      %1074 = vmatpush.bf16.msra.mxu0 0
      %1075 = vmatpush.bf16.msra.mxu0 0
      %1076 = vmatpush.bf16.msra.mxu0 %v995
      %1077 = vmatpush.bf16.msra.mxu0 %v994
      %1078 = vmatpush.bf16.msra.mxu0 %v993
      %1079 = vmatpush.bf16.msra.mxu0 %v992
      %1080 = vmatmul.bf16.gmra.mxu0 %v1061
      %v1081 = vpop.f32.mrf.mxu0
      %v1082 = vadd.f32 %v1003, %v1081
      %v1083 = vpop.f32.mrf.mxu0
      %v1084 = vadd.f32 %v1008, %v1083
      %1085 = vmatmul.bf16.gmra.mxu0 %v1064
      %v1086 = vpop.f32.mrf.mxu0
      %v1087 = vadd.f32 %v1013, %v1086
      %v1088 = vpop.f32.mrf.mxu0
      %v1089 = vadd.f32 %v1018, %v1088
      %1090 = vmatmul.bf16.gmra.mxu0 %v1067
      %v1091 = vpop.f32.mrf.mxu0
      %v1092 = vadd.f32 %v1023, %v1091
      %v1093 = vpop.f32.mrf.mxu0
      %v1094 = vadd.f32 %v1028, %v1093
      %1095 = vmatmul.bf16.gmra.mxu0 %v1070
      %v1096 = vpop.f32.mrf.mxu0
      %v1097 = vadd.f32 %v1033, %v1096
      %v1098 = vpop.f32.mrf.mxu0
      %v1099 = vadd.f32 %v1038, %v1098
      %1100 = vdwg.mxu0
      %v1101 = vmax.f32 %v1082, 0.0
      %v1102 = vmax.f32 %v1084, 0.0
      %v1103 = vmax.f32 %v1087, 0.0
      %v1104 = vmax.f32 %v1089, 0.0
      %v1105 = vmax.f32 %v1092, 0.0
      %v1106 = vmax.f32 %v1094, 0.0
      %v1107 = vmax.f32 %v1097, 0.0
      %v1108 = vmax.f32 %v1099, 0.0
      %1109 = vmatpush.bf16.msra.mxu0 0
      %1110 = vmatpush.bf16.msra.mxu0 0
      %1111 = vmatpush.bf16.msra.mxu0 0
      %1112 = vmatpush.bf16.msra.mxu0 0
      %1113 = vmatpush.bf16.msra.mxu0 %v999
      %1114 = vmatpush.bf16.msra.mxu0 %v998
      %1115 = vmatpush.bf16.msra.mxu0 %v997
      %1116 = vmatpush.bf16.msra.mxu0 %v996
      %1117 = vmatmul.bf16.gmra.mxu0 %v1061
      %v1118 = vpop.f32.mrf.mxu0
      %v1119 = vadd.f32 %v1003, %v1118
      %v1120 = vpop.f32.mrf.mxu0
      %v1121 = vadd.f32 %v1008, %v1120
      %1122 = vmatmul.bf16.gmra.mxu0 %v1064
      %v1123 = vpop.f32.mrf.mxu0
      %v1124 = vadd.f32 %v1013, %v1123
      %v1125 = vpop.f32.mrf.mxu0
      %v1126 = vadd.f32 %v1018, %v1125
      %1127 = vmatmul.bf16.gmra.mxu0 %v1067
      %v1128 = vpop.f32.mrf.mxu0
      %v1129 = vadd.f32 %v1023, %v1128
      %v1130 = vpop.f32.mrf.mxu0
      %v1131 = vadd.f32 %v1028, %v1130
      %1132 = vmatmul.bf16.gmra.mxu0 %v1070
      %v1133 = vpop.f32.mrf.mxu0
      %v1134 = vadd.f32 %v1033, %v1133
      %v1135 = vpop.f32.mrf.mxu0
      %v1136 = vadd.f32 %v1038, %v1135
      %1137 = vdwg.mxu0
      %v1138 = vmax.f32 %v1119, 0.0
      %v1139 = vmax.f32 %v1121, 0.0
      %v1140 = vmax.f32 %v1124, 0.0
      %v1141 = vmax.f32 %v1126, 0.0
      %v1142 = vmax.f32 %v1129, 0.0
      %v1143 = vmax.f32 %v1131, 0.0
      %v1144 = vmax.f32 %v1134, 0.0
      %v1145 = vmax.f32 %v1136, 0.0
      %s1146 = scalar_lea.vmem %s3, 128
      %v1147 = vld [vmem:[%s1146] sm:$0xf]
      %v1148 = vld [vmem:[%s1146 + $0x4] sm:$0xf]
      %v1149 = vld [vmem:[%s1146 + $0x8] sm:$0xf]
      %v1150 = vld [vmem:[%s1146 + $0xc] sm:$0xf]
      %v1151 = vld [vmem:[%s1146 + $0x10] sm:$0xf]
      %v1152 = vld [vmem:[%s1146 + $0x14] sm:$0xf]
      %v1153 = vld [vmem:[%s1146 + $0x18] sm:$0xf]
      %v1154 = vld [vmem:[%s1146 + $0x1c] sm:$0xf]
      %s1155 = scalar_lea.vmem %s4, 256
      %v1156 = vld [vmem:[%s1155] sm:$0xff]
      %v1157 = vld [vmem:[%s1155 + $0x8] sm:$0xff]
      %v1158 = vld [vmem:[%s1155 + $0x10] sm:$0xff]
      %v1159 = vld [vmem:[%s1155 + $0x18] sm:$0xff]
      %v1160 = vld [vmem:[%s1155 + $0x20] sm:$0xff]
      %v1161 = vld [vmem:[%s1155 + $0x28] sm:$0xff]
      %v1162 = vld [vmem:[%s1155 + $0x30] sm:$0xff]
      %v1163 = vld [vmem:[%s1155 + $0x38] sm:$0xff]
      %v1164 = vpack.c.bf16 %v1102, %v1101
      %v1165 = vpack.c.bf16 %v1104, %v1103
      %v1166 = vpack.c.bf16 %v1106, %v1105
      %v1167 = vpack.c.bf16 %v1108, %v1107
      %v1168 = vpack.c.bf16 %v1139, %v1138
      %v1169 = vpack.c.bf16 %v1141, %v1140
      %v1170 = vpack.c.bf16 %v1143, %v1142
      %v1171 = vpack.c.bf16 %v1145, %v1144
      %1173 = vset.pattern.permute.xlu0 0
      %1174 = vperm.xlu0 %1173, %v1156
      %v1175 = vpop.permute.xlu0 %1174
      %1178 = vset.pattern.permute.xlu0 0
      %1179 = vperm.xlu0 %1178, %v1157
      %v1180 = vpop.permute.xlu0 %1179
      %1183 = vset.pattern.permute.xlu0 0
      %1184 = vperm.xlu0 %1183, %v1158
      %v1185 = vpop.permute.xlu0 %1184
      %1188 = vset.pattern.permute.xlu0 0
      %1189 = vperm.xlu0 %1188, %v1159
      %v1190 = vpop.permute.xlu0 %1189
      %1193 = vset.pattern.permute.xlu0 0
      %1194 = vperm.xlu0 %1193, %v1160
      %v1195 = vpop.permute.xlu0 %1194
      %1198 = vset.pattern.permute.xlu0 0
      %1199 = vperm.xlu0 %1198, %v1161
      %v1200 = vpop.permute.xlu0 %1199
      %1203 = vset.pattern.permute.xlu0 0
      %1204 = vperm.xlu0 %1203, %v1162
      %v1205 = vpop.permute.xlu0 %1204
      %1208 = vset.pattern.permute.xlu0 0
      %1209 = vperm.xlu0 %1208, %v1163
      %v1210 = vpop.permute.xlu0 %1209
      %v1220 = vunpack.c.l.b16 %v1147
      %v1221 = vunpack.c.l.b16 %v1148
      %v1222 = vunpack.c.l.b16 %v1149
      %v1223 = vunpack.c.l.b16 %v1150
      %v1224 = vunpack.c.l.b16 %v1151
      %v1225 = vunpack.c.l.b16 %v1152
      %v1226 = vunpack.c.l.b16 %v1153
      %v1227 = vunpack.c.l.b16 %v1154
      %v1228 = vpack.c.b16 %v1221, %v1220
      %v1229 = vpack.c.b16 %v1223, %v1222
      %v1230 = vpack.c.b16 %v1225, %v1224
      %v1231 = vpack.c.b16 %v1227, %v1226
      %v1233 = vsel %vm543, %v1228, 0
      %v1236 = vsel %vm543, %v1229, 0
      %v1239 = vsel %vm543, %v1230, 0
      %v1242 = vsel %vm543, %v1231, 0
      %1244 = vmatpush.bf16.msra.mxu0 0
      %1245 = vmatpush.bf16.msra.mxu0 0
      %1246 = vmatpush.bf16.msra.mxu0 0
      %1247 = vmatpush.bf16.msra.mxu0 0
      %1248 = vmatpush.bf16.msra.mxu0 %v1167
      %1249 = vmatpush.bf16.msra.mxu0 %v1166
      %1250 = vmatpush.bf16.msra.mxu0 %v1165
      %1251 = vmatpush.bf16.msra.mxu0 %v1164
      %1252 = vmatmul.bf16.gmra.mxu0 %v1233
      %v1253 = vpop.f32.mrf.mxu0
      %v1254 = vadd.f32 %v1175, %v1253
      %v1255 = vpop.f32.mrf.mxu0
      %v1256 = vadd.f32 %v1180, %v1255
      %1257 = vmatmul.bf16.gmra.mxu0 %v1236
      %v1258 = vpop.f32.mrf.mxu0
      %v1259 = vadd.f32 %v1185, %v1258
      %v1260 = vpop.f32.mrf.mxu0
      %v1261 = vadd.f32 %v1190, %v1260
      %1262 = vmatmul.bf16.gmra.mxu0 %v1239
      %v1263 = vpop.f32.mrf.mxu0
      %v1264 = vadd.f32 %v1195, %v1263
      %v1265 = vpop.f32.mrf.mxu0
      %v1266 = vadd.f32 %v1200, %v1265
      %1267 = vmatmul.bf16.gmra.mxu0 %v1242
      %v1268 = vpop.f32.mrf.mxu0
      %v1269 = vadd.f32 %v1205, %v1268
      %v1270 = vpop.f32.mrf.mxu0
      %v1271 = vadd.f32 %v1210, %v1270
      %1272 = vdwg.mxu0
      %v1273 = vmax.f32 %v1254, 0.0
      %v1274 = vmax.f32 %v1256, 0.0
      %v1275 = vmax.f32 %v1259, 0.0
      %v1276 = vmax.f32 %v1261, 0.0
      %v1277 = vmax.f32 %v1264, 0.0
      %v1278 = vmax.f32 %v1266, 0.0
      %v1279 = vmax.f32 %v1269, 0.0
      %v1280 = vmax.f32 %v1271, 0.0
      %1281 = vmatpush.bf16.msra.mxu0 0
      %1282 = vmatpush.bf16.msra.mxu0 0
      %1283 = vmatpush.bf16.msra.mxu0 0
      %1284 = vmatpush.bf16.msra.mxu0 0
      %1285 = vmatpush.bf16.msra.mxu0 %v1171
      %1286 = vmatpush.bf16.msra.mxu0 %v1170
      %1287 = vmatpush.bf16.msra.mxu0 %v1169
      %1288 = vmatpush.bf16.msra.mxu0 %v1168
      %1289 = vmatmul.bf16.gmra.mxu0 %v1233
      %v1290 = vpop.f32.mrf.mxu0
      %v1291 = vadd.f32 %v1175, %v1290
      %v1292 = vpop.f32.mrf.mxu0
      %v1293 = vadd.f32 %v1180, %v1292
      %1294 = vmatmul.bf16.gmra.mxu0 %v1236
      %v1295 = vpop.f32.mrf.mxu0
      %v1296 = vadd.f32 %v1185, %v1295
      %v1297 = vpop.f32.mrf.mxu0
      %v1298 = vadd.f32 %v1190, %v1297
      %1299 = vmatmul.bf16.gmra.mxu0 %v1239
      %v1300 = vpop.f32.mrf.mxu0
      %v1301 = vadd.f32 %v1195, %v1300
      %v1302 = vpop.f32.mrf.mxu0
      %v1303 = vadd.f32 %v1200, %v1302
      %1304 = vmatmul.bf16.gmra.mxu0 %v1242
      %v1305 = vpop.f32.mrf.mxu0
      %v1306 = vadd.f32 %v1205, %v1305
      %v1307 = vpop.f32.mrf.mxu0
      %v1308 = vadd.f32 %v1210, %v1307
      %1309 = vdwg.mxu0
      %v1310 = vmax.f32 %v1291, 0.0
      %v1311 = vmax.f32 %v1293, 0.0
      %v1312 = vmax.f32 %v1296, 0.0
      %v1313 = vmax.f32 %v1298, 0.0
      %v1314 = vmax.f32 %v1301, 0.0
      %v1315 = vmax.f32 %v1303, 0.0
      %v1316 = vmax.f32 %v1306, 0.0
      %v1317 = vmax.f32 %v1308, 0.0
      %s1318 = scalar_lea.vmem %s3, 160
      %v1319 = vld [vmem:[%s1318] sm:$0xf]
      %v1320 = vld [vmem:[%s1318 + $0x4] sm:$0xf]
      %v1321 = vld [vmem:[%s1318 + $0x8] sm:$0xf]
      %v1322 = vld [vmem:[%s1318 + $0xc] sm:$0xf]
      %v1323 = vld [vmem:[%s1318 + $0x10] sm:$0xf]
      %v1324 = vld [vmem:[%s1318 + $0x14] sm:$0xf]
      %v1325 = vld [vmem:[%s1318 + $0x18] sm:$0xf]
      %v1326 = vld [vmem:[%s1318 + $0x1c] sm:$0xf]
      %s1327 = scalar_lea.vmem %s4, 320
      %v1328 = vld [vmem:[%s1327] sm:$0xff]
      %v1329 = vld [vmem:[%s1327 + $0x8] sm:$0xff]
      %v1330 = vld [vmem:[%s1327 + $0x10] sm:$0xff]
      %v1331 = vld [vmem:[%s1327 + $0x18] sm:$0xff]
      %v1332 = vld [vmem:[%s1327 + $0x20] sm:$0xff]
      %v1333 = vld [vmem:[%s1327 + $0x28] sm:$0xff]
      %v1334 = vld [vmem:[%s1327 + $0x30] sm:$0xff]
      %v1335 = vld [vmem:[%s1327 + $0x38] sm:$0xff]
      %v1336 = vpack.c.bf16 %v1274, %v1273
      %v1337 = vpack.c.bf16 %v1276, %v1275
      %v1338 = vpack.c.bf16 %v1278, %v1277
      %v1339 = vpack.c.bf16 %v1280, %v1279
      %v1340 = vpack.c.bf16 %v1311, %v1310
      %v1341 = vpack.c.bf16 %v1313, %v1312
      %v1342 = vpack.c.bf16 %v1315, %v1314
      %v1343 = vpack.c.bf16 %v1317, %v1316
      %1345 = vset.pattern.permute.xlu0 0
      %1346 = vperm.xlu0 %1345, %v1328
      %v1347 = vpop.permute.xlu0 %1346
      %1350 = vset.pattern.permute.xlu0 0
      %1351 = vperm.xlu0 %1350, %v1329
      %v1352 = vpop.permute.xlu0 %1351
      %1355 = vset.pattern.permute.xlu0 0
      %1356 = vperm.xlu0 %1355, %v1330
      %v1357 = vpop.permute.xlu0 %1356
      %1360 = vset.pattern.permute.xlu0 0
      %1361 = vperm.xlu0 %1360, %v1331
      %v1362 = vpop.permute.xlu0 %1361
      %1365 = vset.pattern.permute.xlu0 0
      %1366 = vperm.xlu0 %1365, %v1332
      %v1367 = vpop.permute.xlu0 %1366
      %1370 = vset.pattern.permute.xlu0 0
      %1371 = vperm.xlu0 %1370, %v1333
      %v1372 = vpop.permute.xlu0 %1371
      %1375 = vset.pattern.permute.xlu0 0
      %1376 = vperm.xlu0 %1375, %v1334
      %v1377 = vpop.permute.xlu0 %1376
      %1380 = vset.pattern.permute.xlu0 0
      %1381 = vperm.xlu0 %1380, %v1335
      %v1382 = vpop.permute.xlu0 %1381
      %v1392 = vunpack.c.l.b16 %v1319
      %v1393 = vunpack.c.l.b16 %v1320
      %v1394 = vunpack.c.l.b16 %v1321
      %v1395 = vunpack.c.l.b16 %v1322
      %v1396 = vunpack.c.l.b16 %v1323
      %v1397 = vunpack.c.l.b16 %v1324
      %v1398 = vunpack.c.l.b16 %v1325
      %v1399 = vunpack.c.l.b16 %v1326
      %v1400 = vpack.c.b16 %v1393, %v1392
      %v1401 = vpack.c.b16 %v1395, %v1394
      %v1402 = vpack.c.b16 %v1397, %v1396
      %v1403 = vpack.c.b16 %v1399, %v1398
      %v1405 = vsel %vm543, %v1400, 0
      %v1408 = vsel %vm543, %v1401, 0
      %v1411 = vsel %vm543, %v1402, 0
      %v1414 = vsel %vm543, %v1403, 0
      %1416 = vmatpush.bf16.msra.mxu0 0
      %1417 = vmatpush.bf16.msra.mxu0 0
      %1418 = vmatpush.bf16.msra.mxu0 0
      %1419 = vmatpush.bf16.msra.mxu0 0
      %1420 = vmatpush.bf16.msra.mxu0 %v1339
      %1421 = vmatpush.bf16.msra.mxu0 %v1338
      %1422 = vmatpush.bf16.msra.mxu0 %v1337
      %1423 = vmatpush.bf16.msra.mxu0 %v1336
      %1424 = vmatmul.bf16.gmra.mxu0 %v1405
      %v1425 = vpop.f32.mrf.mxu0
      %v1426 = vadd.f32 %v1347, %v1425
      %v1427 = vpop.f32.mrf.mxu0
      %v1428 = vadd.f32 %v1352, %v1427
      %1429 = vmatmul.bf16.gmra.mxu0 %v1408
      %v1430 = vpop.f32.mrf.mxu0
      %v1431 = vadd.f32 %v1357, %v1430
      %v1432 = vpop.f32.mrf.mxu0
      %v1433 = vadd.f32 %v1362, %v1432
      %1434 = vmatmul.bf16.gmra.mxu0 %v1411
      %v1435 = vpop.f32.mrf.mxu0
      %v1436 = vadd.f32 %v1367, %v1435
      %v1437 = vpop.f32.mrf.mxu0
      %v1438 = vadd.f32 %v1372, %v1437
      %1439 = vmatmul.bf16.gmra.mxu0 %v1414
      %v1440 = vpop.f32.mrf.mxu0
      %v1441 = vadd.f32 %v1377, %v1440
      %v1442 = vpop.f32.mrf.mxu0
      %v1443 = vadd.f32 %v1382, %v1442
      %1444 = vdwg.mxu0
      %v1445 = vmax.f32 %v1426, 0.0
      %v1446 = vmax.f32 %v1428, 0.0
      %v1447 = vmax.f32 %v1431, 0.0
      %v1448 = vmax.f32 %v1433, 0.0
      %v1449 = vmax.f32 %v1436, 0.0
      %v1450 = vmax.f32 %v1438, 0.0
      %v1451 = vmax.f32 %v1441, 0.0
      %v1452 = vmax.f32 %v1443, 0.0
      %1453 = vmatpush.bf16.msra.mxu0 0
      %1454 = vmatpush.bf16.msra.mxu0 0
      %1455 = vmatpush.bf16.msra.mxu0 0
      %1456 = vmatpush.bf16.msra.mxu0 0
      %1457 = vmatpush.bf16.msra.mxu0 %v1343
      %1458 = vmatpush.bf16.msra.mxu0 %v1342
      %1459 = vmatpush.bf16.msra.mxu0 %v1341
      %1460 = vmatpush.bf16.msra.mxu0 %v1340
      %1461 = vmatmul.bf16.gmra.mxu0 %v1405
      %v1462 = vpop.f32.mrf.mxu0
      %v1463 = vadd.f32 %v1347, %v1462
      %v1464 = vpop.f32.mrf.mxu0
      %v1465 = vadd.f32 %v1352, %v1464
      %1466 = vmatmul.bf16.gmra.mxu0 %v1408
      %v1467 = vpop.f32.mrf.mxu0
      %v1468 = vadd.f32 %v1357, %v1467
      %v1469 = vpop.f32.mrf.mxu0
      %v1470 = vadd.f32 %v1362, %v1469
      %1471 = vmatmul.bf16.gmra.mxu0 %v1411
      %v1472 = vpop.f32.mrf.mxu0
      %v1473 = vadd.f32 %v1367, %v1472
      %v1474 = vpop.f32.mrf.mxu0
      %v1475 = vadd.f32 %v1372, %v1474
      %1476 = vmatmul.bf16.gmra.mxu0 %v1414
      %v1477 = vpop.f32.mrf.mxu0
      %v1478 = vadd.f32 %v1377, %v1477
      %v1479 = vpop.f32.mrf.mxu0
      %v1480 = vadd.f32 %v1382, %v1479
      %1481 = vdwg.mxu0
      %v1482 = vmax.f32 %v1463, 0.0
      %v1483 = vmax.f32 %v1465, 0.0
      %v1484 = vmax.f32 %v1468, 0.0
      %v1485 = vmax.f32 %v1470, 0.0
      %v1486 = vmax.f32 %v1473, 0.0
      %v1487 = vmax.f32 %v1475, 0.0
      %v1488 = vmax.f32 %v1478, 0.0
      %v1489 = vmax.f32 %v1480, 0.0
      %s1490 = scalar_lea.vmem %s3, 192
      %v1491 = vld [vmem:[%s1490] sm:$0xf]
      %v1492 = vld [vmem:[%s1490 + $0x4] sm:$0xf]
      %v1493 = vld [vmem:[%s1490 + $0x8] sm:$0xf]
      %v1494 = vld [vmem:[%s1490 + $0xc] sm:$0xf]
      %v1495 = vld [vmem:[%s1490 + $0x10] sm:$0xf]
      %v1496 = vld [vmem:[%s1490 + $0x14] sm:$0xf]
      %v1497 = vld [vmem:[%s1490 + $0x18] sm:$0xf]
      %v1498 = vld [vmem:[%s1490 + $0x1c] sm:$0xf]
      %s1499 = scalar_lea.vmem %s4, 384
      %v1500 = vld [vmem:[%s1499] sm:$0xff]
      %v1501 = vld [vmem:[%s1499 + $0x8] sm:$0xff]
      %v1502 = vld [vmem:[%s1499 + $0x10] sm:$0xff]
      %v1503 = vld [vmem:[%s1499 + $0x18] sm:$0xff]
      %v1504 = vld [vmem:[%s1499 + $0x20] sm:$0xff]
      %v1505 = vld [vmem:[%s1499 + $0x28] sm:$0xff]
      %v1506 = vld [vmem:[%s1499 + $0x30] sm:$0xff]
      %v1507 = vld [vmem:[%s1499 + $0x38] sm:$0xff]
      %v1508 = vpack.c.bf16 %v1446, %v1445
      %v1509 = vpack.c.bf16 %v1448, %v1447
      %v1510 = vpack.c.bf16 %v1450, %v1449
      %v1511 = vpack.c.bf16 %v1452, %v1451
      %v1512 = vpack.c.bf16 %v1483, %v1482
      %v1513 = vpack.c.bf16 %v1485, %v1484
      %v1514 = vpack.c.bf16 %v1487, %v1486
      %v1515 = vpack.c.bf16 %v1489, %v1488
      %1517 = vset.pattern.permute.xlu0 0
      %1518 = vperm.xlu0 %1517, %v1500
      %v1519 = vpop.permute.xlu0 %1518
      %1522 = vset.pattern.permute.xlu0 0
      %1523 = vperm.xlu0 %1522, %v1501
      %v1524 = vpop.permute.xlu0 %1523
      %1527 = vset.pattern.permute.xlu0 0
      %1528 = vperm.xlu0 %1527, %v1502
      %v1529 = vpop.permute.xlu0 %1528
      %1532 = vset.pattern.permute.xlu0 0
      %1533 = vperm.xlu0 %1532, %v1503
      %v1534 = vpop.permute.xlu0 %1533
      %1537 = vset.pattern.permute.xlu0 0
      %1538 = vperm.xlu0 %1537, %v1504
      %v1539 = vpop.permute.xlu0 %1538
      %1542 = vset.pattern.permute.xlu0 0
      %1543 = vperm.xlu0 %1542, %v1505
      %v1544 = vpop.permute.xlu0 %1543
      %1547 = vset.pattern.permute.xlu0 0
      %1548 = vperm.xlu0 %1547, %v1506
      %v1549 = vpop.permute.xlu0 %1548
      %1552 = vset.pattern.permute.xlu0 0
      %1553 = vperm.xlu0 %1552, %v1507
      %v1554 = vpop.permute.xlu0 %1553
      %v1564 = vunpack.c.l.b16 %v1491
      %v1565 = vunpack.c.l.b16 %v1492
      %v1566 = vunpack.c.l.b16 %v1493
      %v1567 = vunpack.c.l.b16 %v1494
      %v1568 = vunpack.c.l.b16 %v1495
      %v1569 = vunpack.c.l.b16 %v1496
      %v1570 = vunpack.c.l.b16 %v1497
      %v1571 = vunpack.c.l.b16 %v1498
      %v1572 = vpack.c.b16 %v1565, %v1564
      %v1573 = vpack.c.b16 %v1567, %v1566
      %v1574 = vpack.c.b16 %v1569, %v1568
      %v1575 = vpack.c.b16 %v1571, %v1570
      %v1577 = vsel %vm543, %v1572, 0
      %v1580 = vsel %vm543, %v1573, 0
      %v1583 = vsel %vm543, %v1574, 0
      %v1586 = vsel %vm543, %v1575, 0
      %1588 = vmatpush.bf16.msra.mxu0 0
      %1589 = vmatpush.bf16.msra.mxu0 0
      %1590 = vmatpush.bf16.msra.mxu0 0
      %1591 = vmatpush.bf16.msra.mxu0 0
      %1592 = vmatpush.bf16.msra.mxu0 %v1511
      %1593 = vmatpush.bf16.msra.mxu0 %v1510
      %1594 = vmatpush.bf16.msra.mxu0 %v1509
      %1595 = vmatpush.bf16.msra.mxu0 %v1508
      %1596 = vmatmul.bf16.gmra.mxu0 %v1577
      %v1597 = vpop.f32.mrf.mxu0
      %v1598 = vadd.f32 %v1519, %v1597
      %v1599 = vpop.f32.mrf.mxu0
      %v1600 = vadd.f32 %v1524, %v1599
      %1601 = vmatmul.bf16.gmra.mxu0 %v1580
      %v1602 = vpop.f32.mrf.mxu0
      %v1603 = vadd.f32 %v1529, %v1602
      %v1604 = vpop.f32.mrf.mxu0
      %v1605 = vadd.f32 %v1534, %v1604
      %1606 = vmatmul.bf16.gmra.mxu0 %v1583
      %v1607 = vpop.f32.mrf.mxu0
      %v1608 = vadd.f32 %v1539, %v1607
      %v1609 = vpop.f32.mrf.mxu0
      %v1610 = vadd.f32 %v1544, %v1609
      %1611 = vmatmul.bf16.gmra.mxu0 %v1586
      %v1612 = vpop.f32.mrf.mxu0
      %v1613 = vadd.f32 %v1549, %v1612
      %v1614 = vpop.f32.mrf.mxu0
      %v1615 = vadd.f32 %v1554, %v1614
      %1616 = vdwg.mxu0
      %v1617 = vmax.f32 %v1598, 0.0
      %v1618 = vmax.f32 %v1600, 0.0
      %v1619 = vmax.f32 %v1603, 0.0
      %v1620 = vmax.f32 %v1605, 0.0
      %v1621 = vmax.f32 %v1608, 0.0
      %v1622 = vmax.f32 %v1610, 0.0
      %v1623 = vmax.f32 %v1613, 0.0
      %v1624 = vmax.f32 %v1615, 0.0
      %1625 = vmatpush.bf16.msra.mxu0 0
      %1626 = vmatpush.bf16.msra.mxu0 0
      %1627 = vmatpush.bf16.msra.mxu0 0
      %1628 = vmatpush.bf16.msra.mxu0 0
      %1629 = vmatpush.bf16.msra.mxu0 %v1515
      %1630 = vmatpush.bf16.msra.mxu0 %v1514
      %1631 = vmatpush.bf16.msra.mxu0 %v1513
      %1632 = vmatpush.bf16.msra.mxu0 %v1512
      %1633 = vmatmul.bf16.gmra.mxu0 %v1577
      %v1634 = vpop.f32.mrf.mxu0
      %v1635 = vadd.f32 %v1519, %v1634
      %v1636 = vpop.f32.mrf.mxu0
      %v1637 = vadd.f32 %v1524, %v1636
      %1638 = vmatmul.bf16.gmra.mxu0 %v1580
      %v1639 = vpop.f32.mrf.mxu0
      %v1640 = vadd.f32 %v1529, %v1639
      %v1641 = vpop.f32.mrf.mxu0
      %v1642 = vadd.f32 %v1534, %v1641
      %1643 = vmatmul.bf16.gmra.mxu0 %v1583
      %v1644 = vpop.f32.mrf.mxu0
      %v1645 = vadd.f32 %v1539, %v1644
      %v1646 = vpop.f32.mrf.mxu0
      %v1647 = vadd.f32 %v1544, %v1646
      %1648 = vmatmul.bf16.gmra.mxu0 %v1586
      %v1649 = vpop.f32.mrf.mxu0
      %v1650 = vadd.f32 %v1549, %v1649
      %v1651 = vpop.f32.mrf.mxu0
      %v1652 = vadd.f32 %v1554, %v1651
      %1653 = vdwg.mxu0
      %v1654 = vmax.f32 %v1635, 0.0
      %v1655 = vmax.f32 %v1637, 0.0
      %v1656 = vmax.f32 %v1640, 0.0
      %v1657 = vmax.f32 %v1642, 0.0
      %v1658 = vmax.f32 %v1645, 0.0
      %v1659 = vmax.f32 %v1647, 0.0
      %v1660 = vmax.f32 %v1650, 0.0
      %v1661 = vmax.f32 %v1652, 0.0
      %s1662 = scalar_lea.vmem %s3, 224
      %v1663 = vld [vmem:[%s1662] sm:$0xf]
      %v1664 = vld [vmem:[%s1662 + $0x4] sm:$0xf]
      %v1665 = vld [vmem:[%s1662 + $0x8] sm:$0xf]
      %v1666 = vld [vmem:[%s1662 + $0xc] sm:$0xf]
      %v1667 = vld [vmem:[%s1662 + $0x10] sm:$0xf]
      %v1668 = vld [vmem:[%s1662 + $0x14] sm:$0xf]
      %v1669 = vld [vmem:[%s1662 + $0x18] sm:$0xf]
      %v1670 = vld [vmem:[%s1662 + $0x1c] sm:$0xf]
      %s1671 = scalar_lea.vmem %s4, 448
      %v1672 = vld [vmem:[%s1671] sm:$0xff]
      %v1673 = vld [vmem:[%s1671 + $0x8] sm:$0xff]
      %v1674 = vld [vmem:[%s1671 + $0x10] sm:$0xff]
      %v1675 = vld [vmem:[%s1671 + $0x18] sm:$0xff]
      %v1676 = vld [vmem:[%s1671 + $0x20] sm:$0xff]
      %v1677 = vld [vmem:[%s1671 + $0x28] sm:$0xff]
      %v1678 = vld [vmem:[%s1671 + $0x30] sm:$0xff]
      %v1679 = vld [vmem:[%s1671 + $0x38] sm:$0xff]
      %v1680 = vpack.c.bf16 %v1618, %v1617
      %v1681 = vpack.c.bf16 %v1620, %v1619
      %v1682 = vpack.c.bf16 %v1622, %v1621
      %v1683 = vpack.c.bf16 %v1624, %v1623
      %v1684 = vpack.c.bf16 %v1655, %v1654
      %v1685 = vpack.c.bf16 %v1657, %v1656
      %v1686 = vpack.c.bf16 %v1659, %v1658
      %v1687 = vpack.c.bf16 %v1661, %v1660
      %1689 = vset.pattern.permute.xlu0 0
      %1690 = vperm.xlu0 %1689, %v1672
      %v1691 = vpop.permute.xlu0 %1690
      %1694 = vset.pattern.permute.xlu0 0
      %1695 = vperm.xlu0 %1694, %v1673
      %v1696 = vpop.permute.xlu0 %1695
      %1699 = vset.pattern.permute.xlu0 0
      %1700 = vperm.xlu0 %1699, %v1674
      %v1701 = vpop.permute.xlu0 %1700
      %1704 = vset.pattern.permute.xlu0 0
      %1705 = vperm.xlu0 %1704, %v1675
      %v1706 = vpop.permute.xlu0 %1705
      %1709 = vset.pattern.permute.xlu0 0
      %1710 = vperm.xlu0 %1709, %v1676
      %v1711 = vpop.permute.xlu0 %1710
      %1714 = vset.pattern.permute.xlu0 0
      %1715 = vperm.xlu0 %1714, %v1677
      %v1716 = vpop.permute.xlu0 %1715
      %1719 = vset.pattern.permute.xlu0 0
      %1720 = vperm.xlu0 %1719, %v1678
      %v1721 = vpop.permute.xlu0 %1720
      %1724 = vset.pattern.permute.xlu0 0
      %1725 = vperm.xlu0 %1724, %v1679
      %v1726 = vpop.permute.xlu0 %1725
      %v1736 = vunpack.c.l.b16 %v1663
      %v1737 = vunpack.c.l.b16 %v1664
      %v1738 = vunpack.c.l.b16 %v1665
      %v1739 = vunpack.c.l.b16 %v1666
      %v1740 = vunpack.c.l.b16 %v1667
      %v1741 = vunpack.c.l.b16 %v1668
      %v1742 = vunpack.c.l.b16 %v1669
      %v1743 = vunpack.c.l.b16 %v1670
      %v1744 = vpack.c.b16 %v1737, %v1736
      %v1745 = vpack.c.b16 %v1739, %v1738
      %v1746 = vpack.c.b16 %v1741, %v1740
      %v1747 = vpack.c.b16 %v1743, %v1742
      %v1749 = vsel %vm543, %v1744, 0
      %v1752 = vsel %vm543, %v1745, 0
      %v1755 = vsel %vm543, %v1746, 0
      %v1758 = vsel %vm543, %v1747, 0
      %1760 = vmatpush.bf16.msra.mxu0 0
      %1761 = vmatpush.bf16.msra.mxu0 0
      %1762 = vmatpush.bf16.msra.mxu0 0
      %1763 = vmatpush.bf16.msra.mxu0 0
      %1764 = vmatpush.bf16.msra.mxu0 %v1683
      %1765 = vmatpush.bf16.msra.mxu0 %v1682
      %1766 = vmatpush.bf16.msra.mxu0 %v1681
      %1767 = vmatpush.bf16.msra.mxu0 %v1680
      %1768 = vmatmul.bf16.gmra.mxu0 %v1749
      %v1769 = vpop.f32.mrf.mxu0
      %v1770 = vadd.f32 %v1691, %v1769
      %v1771 = vpop.f32.mrf.mxu0
      %v1772 = vadd.f32 %v1696, %v1771
      %1773 = vmatmul.bf16.gmra.mxu0 %v1752
      %v1774 = vpop.f32.mrf.mxu0
      %v1775 = vadd.f32 %v1701, %v1774
      %v1776 = vpop.f32.mrf.mxu0
      %v1777 = vadd.f32 %v1706, %v1776
      %1778 = vmatmul.bf16.gmra.mxu0 %v1755
      %v1779 = vpop.f32.mrf.mxu0
      %v1780 = vadd.f32 %v1711, %v1779
      %v1781 = vpop.f32.mrf.mxu0
      %v1782 = vadd.f32 %v1716, %v1781
      %1783 = vmatmul.bf16.gmra.mxu0 %v1758
      %v1784 = vpop.f32.mrf.mxu0
      %v1785 = vadd.f32 %v1721, %v1784
      %v1786 = vpop.f32.mrf.mxu0
      %v1787 = vadd.f32 %v1726, %v1786
      %1788 = vdwg.mxu0
      %v1789 = vmax.f32 %v1770, 0.0
      %v1790 = vmax.f32 %v1772, 0.0
      %v1791 = vmax.f32 %v1775, 0.0
      %v1792 = vmax.f32 %v1777, 0.0
      %v1793 = vmax.f32 %v1780, 0.0
      %v1794 = vmax.f32 %v1782, 0.0
      %v1795 = vmax.f32 %v1785, 0.0
      %v1796 = vmax.f32 %v1787, 0.0
      %1797 = vmatpush.bf16.msra.mxu0 0
      %1798 = vmatpush.bf16.msra.mxu0 0
      %1799 = vmatpush.bf16.msra.mxu0 0
      %1800 = vmatpush.bf16.msra.mxu0 0
      %1801 = vmatpush.bf16.msra.mxu0 %v1687
      %1802 = vmatpush.bf16.msra.mxu0 %v1686
      %1803 = vmatpush.bf16.msra.mxu0 %v1685
      %1804 = vmatpush.bf16.msra.mxu0 %v1684
      %1805 = vmatmul.bf16.gmra.mxu0 %v1749
      %v1806 = vpop.f32.mrf.mxu0
      %v1807 = vadd.f32 %v1691, %v1806
      %v1808 = vpop.f32.mrf.mxu0
      %v1809 = vadd.f32 %v1696, %v1808
      %1810 = vmatmul.bf16.gmra.mxu0 %v1752
      %v1811 = vpop.f32.mrf.mxu0
      %v1812 = vadd.f32 %v1701, %v1811
      %v1813 = vpop.f32.mrf.mxu0
      %v1814 = vadd.f32 %v1706, %v1813
      %1815 = vmatmul.bf16.gmra.mxu0 %v1755
      %v1816 = vpop.f32.mrf.mxu0
      %v1817 = vadd.f32 %v1711, %v1816
      %v1818 = vpop.f32.mrf.mxu0
      %v1819 = vadd.f32 %v1716, %v1818
      %1820 = vmatmul.bf16.gmra.mxu0 %v1758
      %v1821 = vpop.f32.mrf.mxu0
      %v1822 = vadd.f32 %v1721, %v1821
      %v1823 = vpop.f32.mrf.mxu0
      %v1824 = vadd.f32 %v1726, %v1823
      %1825 = vdwg.mxu0
      %v1826 = vmax.f32 %v1807, 0.0
      %v1827 = vmax.f32 %v1809, 0.0
      %v1828 = vmax.f32 %v1812, 0.0
      %v1829 = vmax.f32 %v1814, 0.0
      %v1830 = vmax.f32 %v1817, 0.0
      %v1831 = vmax.f32 %v1819, 0.0
      %v1832 = vmax.f32 %v1822, 0.0
      %v1833 = vmax.f32 %v1824, 0.0
      %v1834 = vld [vmem:[%s5] sm:$0xff]
      %v1835 = vld [vmem:[%s5 + $0x8] sm:$0xff]
      %v1836 = vld [vmem:[%s5 + $0x10] sm:$0xff]
      %v1837 = vld [vmem:[%s5 + $0x18] sm:$0xff]
      %v1838 = vld [vmem:[%s5 + $0x20] sm:$0xff]
      %v1839 = vld [vmem:[%s5 + $0x28] sm:$0xff]
      %v1840 = vld [vmem:[%s5 + $0x30] sm:$0xff]
      %v1841 = vld [vmem:[%s5 + $0x38] sm:$0xff]
      %v1842 = vld [vmem:[#allocation2] sm:$0x1]
      %1844 = vset.pattern.permute.xlu0 0
      %1845 = vperm.xlu0 %1844, %v1834
      %v1846 = vpop.permute.xlu0 %1845
      %1849 = vset.pattern.permute.xlu0 0
      %1850 = vperm.xlu0 %1849, %v1835
      %v1851 = vpop.permute.xlu0 %1850
      %1854 = vset.pattern.permute.xlu0 0
      %1855 = vperm.xlu0 %1854, %v1836
      %v1856 = vpop.permute.xlu0 %1855
      %1859 = vset.pattern.permute.xlu0 0
      %1860 = vperm.xlu0 %1859, %v1837
      %v1861 = vpop.permute.xlu0 %1860
      %1864 = vset.pattern.permute.xlu0 0
      %1865 = vperm.xlu0 %1864, %v1838
      %v1866 = vpop.permute.xlu0 %1865
      %1869 = vset.pattern.permute.xlu0 0
      %1870 = vperm.xlu0 %1869, %v1839
      %v1871 = vpop.permute.xlu0 %1870
      %1874 = vset.pattern.permute.xlu0 0
      %1875 = vperm.xlu0 %1874, %v1840
      %v1876 = vpop.permute.xlu0 %1875
      %1879 = vset.pattern.permute.xlu0 0
      %1880 = vperm.xlu0 %1879, %v1841
      %v1881 = vpop.permute.xlu0 %1880
      %v1883 = vmul.f32 %v1846, %v1789
      %v1884 = vmul.f32 %v1851, %v1790
      %v1885 = vmul.f32 %v1856, %v1791
      %v1886 = vmul.f32 %v1861, %v1792
      %v1887 = vmul.f32 %v1866, %v1793
      %v1888 = vmul.f32 %v1871, %v1794
      %v1889 = vmul.f32 %v1876, %v1795
      %v1890 = vmul.f32 %v1881, %v1796
      %v1891 = vadd.f32 %v1883, %v1884
      %v1892 = vadd.f32 %v1891, %v1885
      %v1893 = vadd.f32 %v1892, %v1886
      %v1894 = vadd.f32 %v1893, %v1887
      %v1895 = vadd.f32 %v1894, %v1888
      %v1896 = vadd.f32 %v1895, %v1889
      %v1897 = vadd.f32 %v1896, %v1890
      %v1898 = vrot.slane %v1897, 4
      %v1899 = vadd.f32 %v1897, %v1898
      %v1900 = vrot.slane %v1899, 2
      %v1901 = vadd.f32 %v1899, %v1900
      %v1902 = vrot.slane %v1901, 1
      %v1903 = vadd.f32 %v1901, %v1902
      %1905 = vset.pattern.permute.xlu0 0
      %1906 = vperm.xlu0 %1905, %v1842
      %v1907 = vpop.permute.xlu0 %1906
      %v1909 = vperm.slane %v1907, 0
      %v1910 = vadd.f32 %v1903, %v1909
      %v1911 = vmul.f32 %v1846, %v1826
      %v1912 = vmul.f32 %v1851, %v1827
      %v1913 = vmul.f32 %v1856, %v1828
      %v1914 = vmul.f32 %v1861, %v1829
      %v1915 = vmul.f32 %v1866, %v1830
      %v1916 = vmul.f32 %v1871, %v1831
      %v1917 = vmul.f32 %v1876, %v1832
      %v1918 = vmul.f32 %v1881, %v1833
      %v1919 = vadd.f32 %v1911, %v1912
      %v1920 = vadd.f32 %v1919, %v1913
      %v1921 = vadd.f32 %v1920, %v1914
      %v1922 = vadd.f32 %v1921, %v1915
      %v1923 = vadd.f32 %v1922, %v1916
      %v1924 = vadd.f32 %v1923, %v1917
      %v1925 = vadd.f32 %v1924, %v1918
      %v1926 = vrot.slane %v1925, 4
      %v1927 = vadd.f32 %v1925, %v1926
      %v1928 = vrot.slane %v1927, 2
      %v1929 = vadd.f32 %v1927, %v1928
      %v1930 = vrot.slane %v1929, 1
      %v1931 = vadd.f32 %v1929, %v1930
      %v1932 = vadd.f32 %v1931, %v1909
      %v1933 = vlaneseq
      %vm1934 = vcmp.ge.s32.totalorder %v1933, 0
      %vm1935 = vcmp.lt.s32.totalorder %v1933, 128
      %vm1936 = vmand %vm1934, %vm1935
      %1937 = vst.msk [vmem:[%s280] sm:$0x1] %vm1936, %v1910
      %1938 = vst.msk [vmem:[%s280 + $0x1] sm:$0x1] %vm1936, %v1932
      %s1939 = smul.u32 2, %s20
      %p1940 = scmp.lt.s32.totalorder %s1939, 3
      %s1941 = scalar_select %p1940, %s1939, 3
      %s1942 = scalar_lea.vmem %s7, %s1941
      // Predicated region
      $region49: #{feedforward_50_pallas.1} parent=47 // pred_check
        %p1943 = pneg %p190
      $region50: #{feedforward_50_pallas.1} parent=47 // pred_check_branch
        %1945 = sbr.rel (%p1943) target = $region52
      $region51: #{feedforward_50_pallas.1} parent=47 // pred_region
        %s1946 = smul.u32 2, %s20
      $region52: #{feedforward_50_pallas.1} parent=47 // pred_fallthru
        _
    $region48: #{feedforward_50_pallas.1} parent=5 // pred_fallthru
      _
    %p1947 = scmp.le.s32.totalorder 2, %s15
    // Predicated region
    $region53: #{feedforward_50_pallas.1} parent=5 // pred_check
      %p1948 = pneg %p1947
    $region54: #{feedforward_50_pallas.1} parent=5 // pred_check_branch
      %1950 = sbr.rel (%p1948) target = $region56
    $region55: #{feedforward_50_pallas.1} parent=5 // pred_region
      %s1951 = ssub.s32 %s15, 2
      // Predicated region
      $region57: #{feedforward_50_pallas.1} parent=55 // pred_check
        %p1952 = pneg %p196
      $region58: #{feedforward_50_pallas.1} parent=55 // pred_check_branch
        %1954 = sbr.rel (%p1952) target = $region60
      $region59: #{feedforward_50_pallas.1} parent=55 // pred_region
        %s1955 = smul.u32 2, %s21
        %p1956 = scmp.lt.s32.totalorder %s1955, 3
        %s1957 = scalar_select %p1956, %s1955, 3
        %s1958 = scalar_lea.vmem %s7, %s1957
      $region60: #{feedforward_50_pallas.1} parent=55 // pred_fallthru
        _
    $region56: #{feedforward_50_pallas.1} parent=5 // pred_fallthru
      _
  $region6: #{feedforward_50_pallas.1} parent=0 // loop_footer
    %s19 = sadd.s32 1, %s15
  $region7: #{feedforward_50_pallas.1} parent=0 // loop_footer_branch
    %14 = sbr.rel target = $region3
  $region8: #{feedforward_50_pallas.1} parent=0 // loop_exit
    _

</llo_original>
